<compile_context>
chip_gen: v6e
topology: v6e:2x2x1
jax: 0.10.0
libtpu: 0.0.40
codegen_flags: <defaults>
</compile_context>

<pallas_src>
import functools
import math

import numpy as np
import jax
import jax.numpy as jnp
from jax import lax
from jax.experimental import pallas as pl
from jax.experimental.pallas import tpu as pltpu


def _conv_out_size(s):
    # k=3, stride=2, pad=1
    return (s - 1) // 2 + 1


# --------------------------------------------------------------------------
# Fused discriminator kernel: all conv+BN+act layers, one batch element / step
# --------------------------------------------------------------------------
def _fused_disc_kernel(*refs, plan):
    """refs = (x_parity_ref, *per-layer param refs, out_ref).

    Layer 0: 3x3/s2/p1 conv as 9 accumulating MXU matmuls over contiguous
             slices of the parity (space-to-depth) input tile in VMEM.
    Layers >= 1 (tiny): conv expressed as constant 0/1 selection matmuls on the
             VMEM-resident activation (avoids any strided in-kernel access).
    BN(eval) scale is pre-folded into the weights; shift + PReLU/ReLU here.
    """
    x_ref = refs[0]
    out_ref = refs[-1]
    params = refs[1:-1]

    idx = 0

    # ---------------- first (dominant) layer ----------------
    l0 = plan[0]
    Ho, Wo, Cin, Cout = l0["Ho"], l0["Wo"], l0["Cin"], l0["Cout"]
    w_ref = params[idx]; idx += 1          # (9, Cin, Cout) bf16, BN scale folded
    shift_ref = params[idx]; idx += 1      # (1, Cout) f32
    if l0["use_prelu"]:
        alpha_ref = params[idx]; idx += 1  # (1, Cout) f32

    acc = jnp.zeros((Ho * Wo, Cout), jnp.float32)
    for kh in range(3):
        for kw in range(3):
            rh, qh = kh % 2, kh // 2
            rw, qw = kw % 2, kw // 2
            # Contiguous slice of the (4, Hp2, Wp2, Cin) parity tile — this IS
            # the im2col, done in VMEM with no HBM expansion.
            tap = x_ref[0, rh * 2 + rw, qh:qh + Ho, qw:qw + Wo, :]   # (Ho,Wo,Cin) f32
            tap = tap.reshape(Ho * Wo, Cin).astype(jnp.bfloat16)
            acc = acc + jnp.dot(tap, w_ref[kh * 3 + kw],
                                preferred_element_type=jnp.float32)
    y = acc + shift_ref[...]
    if l0["use_prelu"]:
        y = jnp.where(y >= 0, y, alpha_ref[...] * y)
    else:
        y = jnp.maximum(y, 0.0)

    # ---------------- remaining (tiny) layers, fully in VMEM ----------------
    for l in plan[1:]:
        g_ref = params[idx]; idx += 1      # (9, P_out, P_in) bf16 0/1 selection
        w_ref = params[idx]; idx += 1      # (9, C_in, C_out) bf16, scale folded
        shift_ref = params[idx]; idx += 1  # (1, C_out) f32
        if l["use_prelu"]:
            alpha_ref = params[idx]; idx += 1

        yb = y.astype(jnp.bfloat16)
        acc = jnp.zeros((l["P_out"], l["Cout"]), jnp.float32)
        for t in range(9):
            # gather the shifted/padded neighbourhood via a 0/1 matmul (exact),
            # then contract channels.
            gathered = jnp.dot(g_ref[t], yb, preferred_element_type=jnp.float32)
            acc = acc + jnp.dot(gathered.astype(jnp.bfloat16), w_ref[t],
                                preferred_element_type=jnp.float32)
        y = acc + shift_ref[...]
        if l["use_prelu"]:
            y = jnp.where(y >= 0, y, alpha_ref[...] * y)
        else:
            y = jnp.maximum(y, 0.0)

    # Last layer always has Cout == 1 -> y is (P_last, 1); Flatten handled by
    # the wrapper reshape (NCHW/NHWC flatten orders coincide for C == 1).
    out_ref[0, :, :] = y.astype(out_ref.dtype)


# --------------------------------------------------------------------------
# One-time parameter preparation (reshape, BN fold, gather matrices)
# --------------------------------------------------------------------------
def prepare_discriminator(disc_params, H, W):
    plan, arrays = [], []
    h, w = H, W
    for li, p in enumerate(disc_params):
        cout, cin = int(p["w"].shape[0]), int(p["w"].shape[1])
        scale = p["gamma"] / jnp.sqrt(p["rvar"] + p["eps"])
        shift = (p["beta"] - p["rmean"] * scale).reshape(1, cout).astype(jnp.float32)
        # OIHW -> (kh, kw, cin, cout) -> (9, cin, cout), BN scale folded in, bf16.
        w_taps = (jnp.transpose(p["w"], (2, 3, 1, 0)).reshape(9, cin, cout)
                  * scale[None, None, :]).astype(jnp.bfloat16)
        ho, wo = _conv_out_size(h), _conv_out_size(w)

        if li == 0:
            plan.append(dict(Ho=ho, Wo=wo, Cin=cin, Cout=cout,
                             use_prelu=bool(p["use_prelu"])))
            arrays.append(w_taps)
        else:
            # Constant 0/1 gather matrices G[t, p_out, p_in] (zero rows = padding).
            g = np.zeros((9, ho * wo, h * w), np.float32)
            for kh in range(3):
                for kw in range(3):
                    t = kh * 3 + kw
                    for i in range(ho):
                        for j in range(wo):
                            r, c = 2 * i + kh - 1, 2 * j + kw - 1
                            if 0 <= r < h and 0 <= c < w:
                                g[t, i * wo + j, r * w + c] = 1.0
            plan.append(dict(P_out=ho * wo, P_in=h * w, Cin=cin, Cout=cout,
                             use_prelu=bool(p["use_prelu"])))
            arrays.append(jnp.asarray(g, jnp.bfloat16))
            arrays.append(w_taps)

        arrays.append(shift)
        if p["use_prelu"]:
            arrays.append(p["alpha"].reshape(1, cout).astype(jnp.float32))
        h, w = ho, wo
    return plan, arrays, (h, w)


# --------------------------------------------------------------------------
# CriticModel.forward for opt.discriminator_type == 'unpair'
# --------------------------------------------------------------------------
def make_critic_forward_unpair(disc_params, x_shape):
    N, C, H, W = x_shape
    plan, arrays, (h_last, w_last) = prepare_discriminator(disc_params, H, W)
    p_last = h_last * w_last

    # Parity (space-to-depth) geometry for the first layer: padded spatial dims
    # rounded up to even so they split cleanly into 2x2 parity planes.
    Hp, Wp = H + 2, W + 2
    Hp_e, Wp_e = Hp + (Hp % 2), Wp + (Wp % 2)
    Hp2, Wp2 = Hp_e // 2, Wp_e // 2

    x_block = (1, 4, Hp2, Wp2, C)
    in_specs = [pl.BlockSpec(x_block, lambda b: (b, 0, 0, 0, 0))]
    for a in arrays:
        in_specs.append(
            pl.BlockSpec(a.shape, (lambda nd: (lambda b: (0,) * nd))(a.ndim)))
    out_spec = pl.BlockSpec((1, p_last, 1), lambda b: (b, 0, 0))

    pallas_fn = pl.pallas_call(
        functools.partial(_fused_disc_kernel, plan=plan),
        out_shape=jax.ShapeDtypeStruct((N, p_last, 1), jnp.float32),
        grid=(N,),
        in_specs=in_specs,
        out_specs=out_spec,
        compiler_params=pltpu.CompilerParams(
            dimension_semantics=("parallel",)),   # v7x: split batch across 2 TCs
    )

    @jax.jit
    def forward(x_nchw):
        # TODO(synk): encoder (pretrained .pt checkpoint + fastai cut_model) is identity here.
        en = x_nchw
        # Single fused layout pass: pad + space-to-depth parity split, which also
        # subsumes the NCHW->channels-last transpose (replaces the old 9x im2col).
        xp = jnp.pad(en, ((0, 0), (0, 0),
                          (1, 1 + (Hp_e - Hp)), (1, 1 + (Wp_e - Wp))))
        xpar = xp.reshape(N, C, Hp2, 2, Wp2, 2)
        xpar = jnp.transpose(xpar, (0, 3, 5, 2, 4, 1)).reshape(N, 4, Hp2, Wp2, C)
        out = pallas_fn(xpar, *arrays)
        return out.reshape(N, p_last)

    return forward


# --------------------------------------------------------------------------
# Deterministic parameter construction (mirrors create_conv_discriminator)
# --------------------------------------------------------------------------
def make_discriminator_params(key, input_channel_num, bn_eps=2e-5):
    num_layer = np.floor(math.log(input_channel_num, 8)).astype(np.uint8)
    layer_channel = [input_channel_num]
    for _ in range(int(num_layer) - 1):
        layer_channel.append(int(layer_channel[-1] / 8))
    layer_channel.append(1)

    params = []
    for i in range(len(layer_channel) - 1):
        cin, cout = layer_channel[i], layer_channel[i + 1]
        key, k1, k2, k3, k4, k5 = jax.random.split(key, 6)
        use_prelu = (i != len(layer_channel) - 2)  # last layer uses ReLU
        params.append(dict(
            w=jax.random.normal(k1, (cout, cin, 3, 3), jnp.float32) * 0.05,  # OIHW
            gamma=1.0 + 0.1 * jax.random.normal(k2, (cout,), jnp.float32),
            beta=0.1 * jax.random.normal(k3, (cout,), jnp.float32),
            rmean=0.1 * jax.random.normal(k4, (cout,), jnp.float32),
            rvar=jnp.abs(jax.random.normal(k5, (cout,), jnp.float32)) + 1.0,
            alpha=jnp.full((cout,), 0.25, jnp.float32),  # PReLU default init
            use_prelu=use_prelu,
            eps=bn_eps,
        ))
    return params


# --------------------------------------------------------------------------
# Pure-JAX reference (NCHW, PyTorch semantics) for verification
# --------------------------------------------------------------------------
def critic_forward_ref(x_nchw, disc_params):
    y = x_nchw
    for p in disc_params:
        y = lax.conv_general_dilated(
            y, p["w"], window_strides=(2, 2), padding=((1, 1), (1, 1)),
            dimension_numbers=("NCHW", "OIHW", "NCHW"))
        scale = p["gamma"] / jnp.sqrt(p["rvar"] + p["eps"])
        shift = p["beta"] - p["rmean"] * scale
        y = y * scale[None, :, None, None] + shift[None, :, None, None]
        if p["use_prelu"]:
            y = jnp.where(y >= 0, y, p["alpha"][None, :, None, None] * y)
        else:
            y = jnp.maximum(y, 0.0)
    return y.reshape(y.shape[0], -1)


if __name__ == "__main__":
    key = jax.random.PRNGKey(0)
    kx, kp = jax.random.split(key)

    # Encoder-output-like shapes: batch=2, channels=128, spatial=16x16 (NCHW).
    # Discriminator channel chain: [128, 16, 1] -> conv+BN+PReLU, conv+BN+ReLU.
    N, C, H, W = 2, 128, 16, 16
    x = jax.random.normal(kx, (N, C, H, W), jnp.float32)

    disc_params = make_discriminator_params(kp, C, bn_eps=2e-5)
    forward = make_critic_forward_unpair(disc_params, (N, C, H, W))

    out = jax.block_until_ready(forward(x))
    ref = jax.block_until_ready(critic_forward_ref(x, disc_params))

    assert out.shape == (N, (H // 4) * (W // 4)), out.shape  # (2, 16)
    np.testing.assert_allclose(np.asarray(out), np.asarray(ref), rtol=2e-2, atol=2e-2)

    print("KERNEL_OK")
</pallas_src>

<mosaic_0001>
module attributes {stable_mosaic.version = 11 : i64} {
  func.func @_fused_disc_kernel(%arg0: i32, %arg1: memref<1x4x9x9x128xf32, #tpu.memory_space<vmem>>, %arg2: memref<9x128x16xbf16, #tpu.memory_space<vmem>>, %arg3: memref<1x16xf32, #tpu.memory_space<vmem>>, %arg4: memref<1x16xf32, #tpu.memory_space<vmem>>, %arg5: memref<9x16x64xbf16, #tpu.memory_space<vmem>>, %arg6: memref<9x16x1xbf16, #tpu.memory_space<vmem>>, %arg7: memref<1x1xf32, #tpu.memory_space<vmem>>, %arg8: memref<1x16x1xf32, #tpu.memory_space<vmem>>) attributes {dimension_semantics = [#tpu.dimension_semantics<parallel>], iteration_bounds = array<i64: 2>, scalar_prefetch = 0 : i64, scratch_operands = 0 : i64, tpu.core_type = #tpu.core_type<tc>, window_params = [{transform_indices = @transform_0, window_bounds = array<i64: 1, 4, 9, 9, 128>}, {pipeline_mode = #tpu.pipeline_mode<synchronous>, transform_indices = @transform_1, window_bounds = array<i64: 9, 128, 16>}, {pipeline_mode = #tpu.pipeline_mode<synchronous>, transform_indices = @transform_2, window_bounds = array<i64: 1, 16>}, {pipeline_mode = #tpu.pipeline_mode<synchronous>, transform_indices = @transform_3, window_bounds = array<i64: 1, 16>}, {pipeline_mode = #tpu.pipeline_mode<synchronous>, transform_indices = @transform_4, window_bounds = array<i64: 9, 16, 64>}, {pipeline_mode = #tpu.pipeline_mode<synchronous>, transform_indices = @transform_5, window_bounds = array<i64: 9, 16, 1>}, {pipeline_mode = #tpu.pipeline_mode<synchronous>, transform_indices = @transform_6, window_bounds = array<i64: 1, 1>}, {transform_indices = @transform_7, window_bounds = array<i64: 1, 16, 1>}]} {
    %cst = arith.constant 0.000000e+00 : f32
    %0 = vector.broadcast %cst : f32 to vector<64x16xf32>
    %c0 = arith.constant 0 : index
    %c0_0 = arith.constant 0 : index
    %c0_1 = arith.constant 0 : index
    %c0_2 = arith.constant 0 : index
    %c0_3 = arith.constant 0 : index
    %1 = vector.load %arg1[%c0, %c0_0, %c0_1, %c0_2, %c0_3] : memref<1x4x9x9x128xf32, #tpu.memory_space<vmem>>, vector<1x1x8x8x128xf32>
    %2 = vector.shape_cast %1 : vector<1x1x8x8x128xf32> to vector<8x8x128xf32>
    %3 = vector.shape_cast %2 : vector<8x8x128xf32> to vector<64x128xf32>
    %4 = arith.truncf %3 : vector<64x128xf32> to vector<64x128xbf16>
    %c0_4 = arith.constant 0 : index
    %c0_5 = arith.constant 0 : index
    %c0_6 = arith.constant 0 : index
    %5 = vector.load %arg2[%c0_4, %c0_5, %c0_6] : memref<9x128x16xbf16, #tpu.memory_space<vmem>>, vector<1x128x16xbf16>
    %6 = vector.shape_cast %5 : vector<1x128x16xbf16> to vector<128x16xbf16>
    %cst_7 = arith.constant dense<0.000000e+00> : vector<64x16xf32>
    %7 = tpu.matmul %4, %6, %cst_7 {dimension_numbers = #tpu.dot_dimension_numbers<[1], [0], [0], [1], [0, 0, 1, 1], [], []>} : vector<64x128xbf16>, vector<128x16xbf16>, vector<64x16xf32> -> vector<64x16xf32>
    %8 = arith.addf %0, %7 : vector<64x16xf32>
    %c0_8 = arith.constant 0 : index
    %c1 = arith.constant 1 : index
    %c0_9 = arith.constant 0 : index
    %c0_10 = arith.constant 0 : index
    %c0_11 = arith.constant 0 : index
    %9 = vector.load %arg1[%c0_8, %c1, %c0_9, %c0_10, %c0_11] : memref<1x4x9x9x128xf32, #tpu.memory_space<vmem>>, vector<1x1x8x8x128xf32>
    %10 = vector.shape_cast %9 : vector<1x1x8x8x128xf32> to vector<8x8x128xf32>
    %11 = vector.shape_cast %10 : vector<8x8x128xf32> to vector<64x128xf32>
    %12 = arith.truncf %11 : vector<64x128xf32> to vector<64x128xbf16>
    %c1_12 = arith.constant 1 : index
    %c0_13 = arith.constant 0 : index
    %c0_14 = arith.constant 0 : index
    %13 = vector.load %arg2[%c1_12, %c0_13, %c0_14] : memref<9x128x16xbf16, #tpu.memory_space<vmem>>, vector<1x128x16xbf16>
    %14 = vector.shape_cast %13 : vector<1x128x16xbf16> to vector<128x16xbf16>
    %cst_15 = arith.constant dense<0.000000e+00> : vector<64x16xf32>
    %15 = tpu.matmul %12, %14, %cst_15 {dimension_numbers = #tpu.dot_dimension_numbers<[1], [0], [0], [1], [0, 0, 1, 1], [], []>} : vector<64x128xbf16>, vector<128x16xbf16>, vector<64x16xf32> -> vector<64x16xf32>
    %16 = arith.addf %8, %15 : vector<64x16xf32>
    %c0_16 = arith.constant 0 : index
    %c0_17 = arith.constant 0 : index
    %c0_18 = arith.constant 0 : index
    %c1_19 = arith.constant 1 : index
    %c0_20 = arith.constant 0 : index
    %17 = vector.load %arg1[%c0_16, %c0_17, %c0_18, %c1_19, %c0_20] : memref<1x4x9x9x128xf32, #tpu.memory_space<vmem>>, vector<1x1x8x8x128xf32>
    %18 = vector.shape_cast %17 : vector<1x1x8x8x128xf32> to vector<8x8x128xf32>
    %19 = vector.shape_cast %18 : vector<8x8x128xf32> to vector<64x128xf32>
    %20 = arith.truncf %19 : vector<64x128xf32> to vector<64x128xbf16>
    %c2 = arith.constant 2 : index
    %c0_21 = arith.constant 0 : index
    %c0_22 = arith.constant 0 : index
    %21 = vector.load %arg2[%c2, %c0_21, %c0_22] : memref<9x128x16xbf16, #tpu.memory_space<vmem>>, vector<1x128x16xbf16>
    %22 = vector.shape_cast %21 : vector<1x128x16xbf16> to vector<128x16xbf16>
    %cst_23 = arith.constant dense<0.000000e+00> : vector<64x16xf32>
    %23 = tpu.matmul %20, %22, %cst_23 {dimension_numbers = #tpu.dot_dimension_numbers<[1], [0], [0], [1], [0, 0, 1, 1], [], []>} : vector<64x128xbf16>, vector<128x16xbf16>, vector<64x16xf32> -> vector<64x16xf32>
    %24 = arith.addf %16, %23 : vector<64x16xf32>
    %c0_24 = arith.constant 0 : index
    %c2_25 = arith.constant 2 : index
    %c0_26 = arith.constant 0 : index
    %c0_27 = arith.constant 0 : index
    %c0_28 = arith.constant 0 : index
    %25 = vector.load %arg1[%c0_24, %c2_25, %c0_26, %c0_27, %c0_28] : memref<1x4x9x9x128xf32, #tpu.memory_space<vmem>>, vector<1x1x8x8x128xf32>
    %26 = vector.shape_cast %25 : vector<1x1x8x8x128xf32> to vector<8x8x128xf32>
    %27 = vector.shape_cast %26 : vector<8x8x128xf32> to vector<64x128xf32>
    %28 = arith.truncf %27 : vector<64x128xf32> to vector<64x128xbf16>
    %c3 = arith.constant 3 : index
    %c0_29 = arith.constant 0 : index
    %c0_30 = arith.constant 0 : index
    %29 = vector.load %arg2[%c3, %c0_29, %c0_30] : memref<9x128x16xbf16, #tpu.memory_space<vmem>>, vector<1x128x16xbf16>
    %30 = vector.shape_cast %29 : vector<1x128x16xbf16> to vector<128x16xbf16>
    %cst_31 = arith.constant dense<0.000000e+00> : vector<64x16xf32>
    %31 = tpu.matmul %28, %30, %cst_31 {dimension_numbers = #tpu.dot_dimension_numbers<[1], [0], [0], [1], [0, 0, 1, 1], [], []>} : vector<64x128xbf16>, vector<128x16xbf16>, vector<64x16xf32> -> vector<64x16xf32>
    %32 = arith.addf %24, %31 : vector<64x16xf32>
    %c0_32 = arith.constant 0 : index
    %c3_33 = arith.constant 3 : index
    %c0_34 = arith.constant 0 : index
    %c0_35 = arith.constant 0 : index
    %c0_36 = arith.constant 0 : index
    %33 = vector.load %arg1[%c0_32, %c3_33, %c0_34, %c0_35, %c0_36] : memref<1x4x9x9x128xf32, #tpu.memory_space<vmem>>, vector<1x1x8x8x128xf32>
    %34 = vector.shape_cast %33 : vector<1x1x8x8x128xf32> to vector<8x8x128xf32>
    %35 = vector.shape_cast %34 : vector<8x8x128xf32> to vector<64x128xf32>
    %36 = arith.truncf %35 : vector<64x128xf32> to vector<64x128xbf16>
    %c4 = arith.constant 4 : index
    %c0_37 = arith.constant 0 : index
    %c0_38 = arith.constant 0 : index
    %37 = vector.load %arg2[%c4, %c0_37, %c0_38] : memref<9x128x16xbf16, #tpu.memory_space<vmem>>, vector<1x128x16xbf16>
    %38 = vector.shape_cast %37 : vector<1x128x16xbf16> to vector<128x16xbf16>
    %cst_39 = arith.constant dense<0.000000e+00> : vector<64x16xf32>
    %39 = tpu.matmul %36, %38, %cst_39 {dimension_numbers = #tpu.dot_dimension_numbers<[1], [0], [0], [1], [0, 0, 1, 1], [], []>} : vector<64x128xbf16>, vector<128x16xbf16>, vector<64x16xf32> -> vector<64x16xf32>
    %40 = arith.addf %32, %39 : vector<64x16xf32>
    %c0_40 = arith.constant 0 : index
    %c2_41 = arith.constant 2 : index
    %c0_42 = arith.constant 0 : index
    %c1_43 = arith.constant 1 : index
    %c0_44 = arith.constant 0 : index
    %41 = vector.load %arg1[%c0_40, %c2_41, %c0_42, %c1_43, %c0_44] : memref<1x4x9x9x128xf32, #tpu.memory_space<vmem>>, vector<1x1x8x8x128xf32>
    %42 = vector.shape_cast %41 : vector<1x1x8x8x128xf32> to vector<8x8x128xf32>
    %43 = vector.shape_cast %42 : vector<8x8x128xf32> to vector<64x128xf32>
    %44 = arith.truncf %43 : vector<64x128xf32> to vector<64x128xbf16>
    %c5 = arith.constant 5 : index
    %c0_45 = arith.constant 0 : index
    %c0_46 = arith.constant 0 : index
    %45 = vector.load %arg2[%c5, %c0_45, %c0_46] : memref<9x128x16xbf16, #tpu.memory_space<vmem>>, vector<1x128x16xbf16>
    %46 = vector.shape_cast %45 : vector<1x128x16xbf16> to vector<128x16xbf16>
    %cst_47 = arith.constant dense<0.000000e+00> : vector<64x16xf32>
    %47 = tpu.matmul %44, %46, %cst_47 {dimension_numbers = #tpu.dot_dimension_numbers<[1], [0], [0], [1], [0, 0, 1, 1], [], []>} : vector<64x128xbf16>, vector<128x16xbf16>, vector<64x16xf32> -> vector<64x16xf32>
    %48 = arith.addf %40, %47 : vector<64x16xf32>
    %c0_48 = arith.constant 0 : index
    %c0_49 = arith.constant 0 : index
    %c1_50 = arith.constant 1 : index
    %c0_51 = arith.constant 0 : index
    %c0_52 = arith.constant 0 : index
    %49 = vector.load %arg1[%c0_48, %c0_49, %c1_50, %c0_51, %c0_52] : memref<1x4x9x9x128xf32, #tpu.memory_space<vmem>>, vector<1x1x8x8x128xf32>
    %50 = vector.shape_cast %49 : vector<1x1x8x8x128xf32> to vector<8x8x128xf32>
    %51 = vector.shape_cast %50 : vector<8x8x128xf32> to vector<64x128xf32>
    %52 = arith.truncf %51 : vector<64x128xf32> to vector<64x128xbf16>
    %c6 = arith.constant 6 : index
    %c0_53 = arith.constant 0 : index
    %c0_54 = arith.constant 0 : index
    %53 = vector.load %arg2[%c6, %c0_53, %c0_54] : memref<9x128x16xbf16, #tpu.memory_space<vmem>>, vector<1x128x16xbf16>
    %54 = vector.shape_cast %53 : vector<1x128x16xbf16> to vector<128x16xbf16>
    %cst_55 = arith.constant dense<0.000000e+00> : vector<64x16xf32>
    %55 = tpu.matmul %52, %54, %cst_55 {dimension_numbers = #tpu.dot_dimension_numbers<[1], [0], [0], [1], [0, 0, 1, 1], [], []>} : vector<64x128xbf16>, vector<128x16xbf16>, vector<64x16xf32> -> vector<64x16xf32>
    %56 = arith.addf %48, %55 : vector<64x16xf32>
    %c0_56 = arith.constant 0 : index
    %c1_57 = arith.constant 1 : index
    %c1_58 = arith.constant 1 : index
    %c0_59 = arith.constant 0 : index
    %c0_60 = arith.constant 0 : index
    %57 = vector.load %arg1[%c0_56, %c1_57, %c1_58, %c0_59, %c0_60] : memref<1x4x9x9x128xf32, #tpu.memory_space<vmem>>, vector<1x1x8x8x128xf32>
    %58 = vector.shape_cast %57 : vector<1x1x8x8x128xf32> to vector<8x8x128xf32>
    %59 = vector.shape_cast %58 : vector<8x8x128xf32> to vector<64x128xf32>
    %60 = arith.truncf %59 : vector<64x128xf32> to vector<64x128xbf16>
    %c7 = arith.constant 7 : index
    %c0_61 = arith.constant 0 : index
    %c0_62 = arith.constant 0 : index
    %61 = vector.load %arg2[%c7, %c0_61, %c0_62] : memref<9x128x16xbf16, #tpu.memory_space<vmem>>, vector<1x128x16xbf16>
    %62 = vector.shape_cast %61 : vector<1x128x16xbf16> to vector<128x16xbf16>
    %cst_63 = arith.constant dense<0.000000e+00> : vector<64x16xf32>
    %63 = tpu.matmul %60, %62, %cst_63 {dimension_numbers = #tpu.dot_dimension_numbers<[1], [0], [0], [1], [0, 0, 1, 1], [], []>} : vector<64x128xbf16>, vector<128x16xbf16>, vector<64x16xf32> -> vector<64x16xf32>
    %64 = arith.addf %56, %63 : vector<64x16xf32>
    %c0_64 = arith.constant 0 : index
    %c0_65 = arith.constant 0 : index
    %c1_66 = arith.constant 1 : index
    %c1_67 = arith.constant 1 : index
    %c0_68 = arith.constant 0 : index
    %65 = vector.load %arg1[%c0_64, %c0_65, %c1_66, %c1_67, %c0_68] : memref<1x4x9x9x128xf32, #tpu.memory_space<vmem>>, vector<1x1x8x8x128xf32>
    %66 = vector.shape_cast %65 : vector<1x1x8x8x128xf32> to vector<8x8x128xf32>
    %67 = vector.shape_cast %66 : vector<8x8x128xf32> to vector<64x128xf32>
    %68 = arith.truncf %67 : vector<64x128xf32> to vector<64x128xbf16>
    %c8 = arith.constant 8 : index
    %c0_69 = arith.constant 0 : index
    %c0_70 = arith.constant 0 : index
    %69 = vector.load %arg2[%c8, %c0_69, %c0_70] : memref<9x128x16xbf16, #tpu.memory_space<vmem>>, vector<1x128x16xbf16>
    %70 = vector.shape_cast %69 : vector<1x128x16xbf16> to vector<128x16xbf16>
    %cst_71 = arith.constant dense<0.000000e+00> : vector<64x16xf32>
    %71 = tpu.matmul %68, %70, %cst_71 {dimension_numbers = #tpu.dot_dimension_numbers<[1], [0], [0], [1], [0, 0, 1, 1], [], []>} : vector<64x128xbf16>, vector<128x16xbf16>, vector<64x16xf32> -> vector<64x16xf32>
    %72 = arith.addf %64, %71 : vector<64x16xf32>
    %c0_72 = arith.constant 0 : index
    %c0_73 = arith.constant 0 : index
    %73 = vector.load %arg3[%c0_72, %c0_73] : memref<1x16xf32, #tpu.memory_space<vmem>>, vector<1x16xf32>
    %74 = vector.broadcast %73 : vector<1x16xf32> to vector<64x16xf32>
    %75 = arith.addf %72, %74 : vector<64x16xf32>
    %cst_74 = arith.constant 0.000000e+00 : f32
    %76 = vector.broadcast %cst_74 : f32 to vector<64x16xf32>
    %77 = arith.cmpf oge, %75, %76 : vector<64x16xf32>
    %c0_75 = arith.constant 0 : index
    %c0_76 = arith.constant 0 : index
    %78 = vector.load %arg4[%c0_75, %c0_76] : memref<1x16xf32, #tpu.memory_space<vmem>>, vector<1x16xf32>
    %79 = vector.broadcast %78 : vector<1x16xf32> to vector<64x16xf32>
    %80 = arith.mulf %79, %75 : vector<64x16xf32>
    %81 = arith.select %77, %75, %80 : vector<64x16xi1>, vector<64x16xf32>
    %82 = arith.truncf %81 : vector<64x16xf32> to vector<64x16xbf16>
    %cst_77 = arith.constant 0.000000e+00 : f32
    %83 = vector.broadcast %cst_77 : f32 to vector<16x1xf32>
    %c0_78 = arith.constant 0 : index
    %c0_79 = arith.constant 0 : index
    %c0_80 = arith.constant 0 : index
    %84 = vector.load %arg5[%c0_78, %c0_79, %c0_80] : memref<9x16x64xbf16, #tpu.memory_space<vmem>>, vector<1x16x64xbf16>
    %85 = vector.shape_cast %84 : vector<1x16x64xbf16> to vector<16x64xbf16>
    %cst_81 = arith.constant dense<0.000000e+00> : vector<16x16xf32>
    %86 = tpu.matmul %85, %82, %cst_81 {dimension_numbers = #tpu.dot_dimension_numbers<[1], [0], [0], [1], [0, 0, 1, 1], [], []>} : vector<16x64xbf16>, vector<64x16xbf16>, vector<16x16xf32> -> vector<16x16xf32>
    %87 = arith.truncf %86 : vector<16x16xf32> to vector<16x16xbf16>
    %c0_82 = arith.constant 0 : index
    %c0_83 = arith.constant 0 : index
    %c0_84 = arith.constant 0 : index
    %88 = vector.load %arg6[%c0_82, %c0_83, %c0_84] : memref<9x16x1xbf16, #tpu.memory_space<vmem>>, vector<1x16x1xbf16>
    %89 = vector.shape_cast %88 : vector<1x16x1xbf16> to vector<16x1xbf16>
    %cst_85 = arith.constant dense<0.000000e+00> : vector<16x1xf32>
    %90 = tpu.matmul %87, %89, %cst_85 {dimension_numbers = #tpu.dot_dimension_numbers<[1], [0], [0], [1], [0, 0, 1, 1], [], []>} : vector<16x16xbf16>, vector<16x1xbf16>, vector<16x1xf32> -> vector<16x1xf32>
    %91 = arith.addf %83, %90 : vector<16x1xf32>
    %c1_86 = arith.constant 1 : index
    %c0_87 = arith.constant 0 : index
    %c0_88 = arith.constant 0 : index
    %92 = vector.load %arg5[%c1_86, %c0_87, %c0_88] : memref<9x16x64xbf16, #tpu.memory_space<vmem>>, vector<1x16x64xbf16>
    %93 = vector.shape_cast %92 : vector<1x16x64xbf16> to vector<16x64xbf16>
    %cst_89 = arith.constant dense<0.000000e+00> : vector<16x16xf32>
    %94 = tpu.matmul %93, %82, %cst_89 {dimension_numbers = #tpu.dot_dimension_numbers<[1], [0], [0], [1], [0, 0, 1, 1], [], []>} : vector<16x64xbf16>, vector<64x16xbf16>, vector<16x16xf32> -> vector<16x16xf32>
    %95 = arith.truncf %94 : vector<16x16xf32> to vector<16x16xbf16>
    %c1_90 = arith.constant 1 : index
    %c0_91 = arith.constant 0 : index
    %c0_92 = arith.constant 0 : index
    %96 = vector.load %arg6[%c1_90, %c0_91, %c0_92] : memref<9x16x1xbf16, #tpu.memory_space<vmem>>, vector<1x16x1xbf16>
    %97 = vector.shape_cast %96 : vector<1x16x1xbf16> to vector<16x1xbf16>
    %cst_93 = arith.constant dense<0.000000e+00> : vector<16x1xf32>
    %98 = tpu.matmul %95, %97, %cst_93 {dimension_numbers = #tpu.dot_dimension_numbers<[1], [0], [0], [1], [0, 0, 1, 1], [], []>} : vector<16x16xbf16>, vector<16x1xbf16>, vector<16x1xf32> -> vector<16x1xf32>
    %99 = arith.addf %91, %98 : vector<16x1xf32>
    %c2_94 = arith.constant 2 : index
    %c0_95 = arith.constant 0 : index
    %c0_96 = arith.constant 0 : index
    %100 = vector.load %arg5[%c2_94, %c0_95, %c0_96] : memref<9x16x64xbf16, #tpu.memory_space<vmem>>, vector<1x16x64xbf16>
    %101 = vector.shape_cast %100 : vector<1x16x64xbf16> to vector<16x64xbf16>
    %cst_97 = arith.constant dense<0.000000e+00> : vector<16x16xf32>
    %102 = tpu.matmul %101, %82, %cst_97 {dimension_numbers = #tpu.dot_dimension_numbers<[1], [0], [0], [1], [0, 0, 1, 1], [], []>} : vector<16x64xbf16>, vector<64x16xbf16>, vector<16x16xf32> -> vector<16x16xf32>
    %103 = arith.truncf %102 : vector<16x16xf32> to vector<16x16xbf16>
    %c2_98 = arith.constant 2 : index
    %c0_99 = arith.constant 0 : index
    %c0_100 = arith.constant 0 : index
    %104 = vector.load %arg6[%c2_98, %c0_99, %c0_100] : memref<9x16x1xbf16, #tpu.memory_space<vmem>>, vector<1x16x1xbf16>
    %105 = vector.shape_cast %104 : vector<1x16x1xbf16> to vector<16x1xbf16>
    %cst_101 = arith.constant dense<0.000000e+00> : vector<16x1xf32>
    %106 = tpu.matmul %103, %105, %cst_101 {dimension_numbers = #tpu.dot_dimension_numbers<[1], [0], [0], [1], [0, 0, 1, 1], [], []>} : vector<16x16xbf16>, vector<16x1xbf16>, vector<16x1xf32> -> vector<16x1xf32>
    %107 = arith.addf %99, %106 : vector<16x1xf32>
    %c3_102 = arith.constant 3 : index
    %c0_103 = arith.constant 0 : index
    %c0_104 = arith.constant 0 : index
    %108 = vector.load %arg5[%c3_102, %c0_103, %c0_104] : memref<9x16x64xbf16, #tpu.memory_space<vmem>>, vector<1x16x64xbf16>
    %109 = vector.shape_cast %108 : vector<1x16x64xbf16> to vector<16x64xbf16>
    %cst_105 = arith.constant dense<0.000000e+00> : vector<16x16xf32>
    %110 = tpu.matmul %109, %82, %cst_105 {dimension_numbers = #tpu.dot_dimension_numbers<[1], [0], [0], [1], [0, 0, 1, 1], [], []>} : vector<16x64xbf16>, vector<64x16xbf16>, vector<16x16xf32> -> vector<16x16xf32>
    %111 = arith.truncf %110 : vector<16x16xf32> to vector<16x16xbf16>
    %c3_106 = arith.constant 3 : index
    %c0_107 = arith.constant 0 : index
    %c0_108 = arith.constant 0 : index
    %112 = vector.load %arg6[%c3_106, %c0_107, %c0_108] : memref<9x16x1xbf16, #tpu.memory_space<vmem>>, vector<1x16x1xbf16>
    %113 = vector.shape_cast %112 : vector<1x16x1xbf16> to vector<16x1xbf16>
    %cst_109 = arith.constant dense<0.000000e+00> : vector<16x1xf32>
    %114 = tpu.matmul %111, %113, %cst_109 {dimension_numbers = #tpu.dot_dimension_numbers<[1], [0], [0], [1], [0, 0, 1, 1], [], []>} : vector<16x16xbf16>, vector<16x1xbf16>, vector<16x1xf32> -> vector<16x1xf32>
    %115 = arith.addf %107, %114 : vector<16x1xf32>
    %c4_110 = arith.constant 4 : index
    %c0_111 = arith.constant 0 : index
    %c0_112 = arith.constant 0 : index
    %116 = vector.load %arg5[%c4_110, %c0_111, %c0_112] : memref<9x16x64xbf16, #tpu.memory_space<vmem>>, vector<1x16x64xbf16>
    %117 = vector.shape_cast %116 : vector<1x16x64xbf16> to vector<16x64xbf16>
    %cst_113 = arith.constant dense<0.000000e+00> : vector<16x16xf32>
    %118 = tpu.matmul %117, %82, %cst_113 {dimension_numbers = #tpu.dot_dimension_numbers<[1], [0], [0], [1], [0, 0, 1, 1], [], []>} : vector<16x64xbf16>, vector<64x16xbf16>, vector<16x16xf32> -> vector<16x16xf32>
    %119 = arith.truncf %118 : vector<16x16xf32> to vector<16x16xbf16>
    %c4_114 = arith.constant 4 : index
    %c0_115 = arith.constant 0 : index
    %c0_116 = arith.constant 0 : index
    %120 = vector.load %arg6[%c4_114, %c0_115, %c0_116] : memref<9x16x1xbf16, #tpu.memory_space<vmem>>, vector<1x16x1xbf16>
    %121 = vector.shape_cast %120 : vector<1x16x1xbf16> to vector<16x1xbf16>
    %cst_117 = arith.constant dense<0.000000e+00> : vector<16x1xf32>
    %122 = tpu.matmul %119, %121, %cst_117 {dimension_numbers = #tpu.dot_dimension_numbers<[1], [0], [0], [1], [0, 0, 1, 1], [], []>} : vector<16x16xbf16>, vector<16x1xbf16>, vector<16x1xf32> -> vector<16x1xf32>
    %123 = arith.addf %115, %122 : vector<16x1xf32>
    %c5_118 = arith.constant 5 : index
    %c0_119 = arith.constant 0 : index
    %c0_120 = arith.constant 0 : index
    %124 = vector.load %arg5[%c5_118, %c0_119, %c0_120] : memref<9x16x64xbf16, #tpu.memory_space<vmem>>, vector<1x16x64xbf16>
    %125 = vector.shape_cast %124 : vector<1x16x64xbf16> to vector<16x64xbf16>
    %cst_121 = arith.constant dense<0.000000e+00> : vector<16x16xf32>
    %126 = tpu.matmul %125, %82, %cst_121 {dimension_numbers = #tpu.dot_dimension_numbers<[1], [0], [0], [1], [0, 0, 1, 1], [], []>} : vector<16x64xbf16>, vector<64x16xbf16>, vector<16x16xf32> -> vector<16x16xf32>
    %127 = arith.truncf %126 : vector<16x16xf32> to vector<16x16xbf16>
    %c5_122 = arith.constant 5 : index
    %c0_123 = arith.constant 0 : index
    %c0_124 = arith.constant 0 : index
    %128 = vector.load %arg6[%c5_122, %c0_123, %c0_124] : memref<9x16x1xbf16, #tpu.memory_space<vmem>>, vector<1x16x1xbf16>
    %129 = vector.shape_cast %128 : vector<1x16x1xbf16> to vector<16x1xbf16>
    %cst_125 = arith.constant dense<0.000000e+00> : vector<16x1xf32>
    %130 = tpu.matmul %127, %129, %cst_125 {dimension_numbers = #tpu.dot_dimension_numbers<[1], [0], [0], [1], [0, 0, 1, 1], [], []>} : vector<16x16xbf16>, vector<16x1xbf16>, vector<16x1xf32> -> vector<16x1xf32>
    %131 = arith.addf %123, %130 : vector<16x1xf32>
    %c6_126 = arith.constant 6 : index
    %c0_127 = arith.constant 0 : index
    %c0_128 = arith.constant 0 : index
    %132 = vector.load %arg5[%c6_126, %c0_127, %c0_128] : memref<9x16x64xbf16, #tpu.memory_space<vmem>>, vector<1x16x64xbf16>
    %133 = vector.shape_cast %132 : vector<1x16x64xbf16> to vector<16x64xbf16>
    %cst_129 = arith.constant dense<0.000000e+00> : vector<16x16xf32>
    %134 = tpu.matmul %133, %82, %cst_129 {dimension_numbers = #tpu.dot_dimension_numbers<[1], [0], [0], [1], [0, 0, 1, 1], [], []>} : vector<16x64xbf16>, vector<64x16xbf16>, vector<16x16xf32> -> vector<16x16xf32>
    %135 = arith.truncf %134 : vector<16x16xf32> to vector<16x16xbf16>
    %c6_130 = arith.constant 6 : index
    %c0_131 = arith.constant 0 : index
    %c0_132 = arith.constant 0 : index
    %136 = vector.load %arg6[%c6_130, %c0_131, %c0_132] : memref<9x16x1xbf16, #tpu.memory_space<vmem>>, vector<1x16x1xbf16>
    %137 = vector.shape_cast %136 : vector<1x16x1xbf16> to vector<16x1xbf16>
    %cst_133 = arith.constant dense<0.000000e+00> : vector<16x1xf32>
    %138 = tpu.matmul %135, %137, %cst_133 {dimension_numbers = #tpu.dot_dimension_numbers<[1], [0], [0], [1], [0, 0, 1, 1], [], []>} : vector<16x16xbf16>, vector<16x1xbf16>, vector<16x1xf32> -> vector<16x1xf32>
    %139 = arith.addf %131, %138 : vector<16x1xf32>
    %c7_134 = arith.constant 7 : index
    %c0_135 = arith.constant 0 : index
    %c0_136 = arith.constant 0 : index
    %140 = vector.load %arg5[%c7_134, %c0_135, %c0_136] : memref<9x16x64xbf16, #tpu.memory_space<vmem>>, vector<1x16x64xbf16>
    %141 = vector.shape_cast %140 : vector<1x16x64xbf16> to vector<16x64xbf16>
    %cst_137 = arith.constant dense<0.000000e+00> : vector<16x16xf32>
    %142 = tpu.matmul %141, %82, %cst_137 {dimension_numbers = #tpu.dot_dimension_numbers<[1], [0], [0], [1], [0, 0, 1, 1], [], []>} : vector<16x64xbf16>, vector<64x16xbf16>, vector<16x16xf32> -> vector<16x16xf32>
    %143 = arith.truncf %142 : vector<16x16xf32> to vector<16x16xbf16>
    %c7_138 = arith.constant 7 : index
    %c0_139 = arith.constant 0 : index
    %c0_140 = arith.constant 0 : index
    %144 = vector.load %arg6[%c7_138, %c0_139, %c0_140] : memref<9x16x1xbf16, #tpu.memory_space<vmem>>, vector<1x16x1xbf16>
    %145 = vector.shape_cast %144 : vector<1x16x1xbf16> to vector<16x1xbf16>
    %cst_141 = arith.constant dense<0.000000e+00> : vector<16x1xf32>
    %146 = tpu.matmul %143, %145, %cst_141 {dimension_numbers = #tpu.dot_dimension_numbers<[1], [0], [0], [1], [0, 0, 1, 1], [], []>} : vector<16x16xbf16>, vector<16x1xbf16>, vector<16x1xf32> -> vector<16x1xf32>
    %147 = arith.addf %139, %146 : vector<16x1xf32>
    %c8_142 = arith.constant 8 : index
    %c0_143 = arith.constant 0 : index
    %c0_144 = arith.constant 0 : index
    %148 = vector.load %arg5[%c8_142, %c0_143, %c0_144] : memref<9x16x64xbf16, #tpu.memory_space<vmem>>, vector<1x16x64xbf16>
    %149 = vector.shape_cast %148 : vector<1x16x64xbf16> to vector<16x64xbf16>
    %cst_145 = arith.constant dense<0.000000e+00> : vector<16x16xf32>
    %150 = tpu.matmul %149, %82, %cst_145 {dimension_numbers = #tpu.dot_dimension_numbers<[1], [0], [0], [1], [0, 0, 1, 1], [], []>} : vector<16x64xbf16>, vector<64x16xbf16>, vector<16x16xf32> -> vector<16x16xf32>
    %151 = arith.truncf %150 : vector<16x16xf32> to vector<16x16xbf16>
    %c8_146 = arith.constant 8 : index
    %c0_147 = arith.constant 0 : index
    %c0_148 = arith.constant 0 : index
    %152 = vector.load %arg6[%c8_146, %c0_147, %c0_148] : memref<9x16x1xbf16, #tpu.memory_space<vmem>>, vector<1x16x1xbf16>
    %153 = vector.shape_cast %152 : vector<1x16x1xbf16> to vector<16x1xbf16>
    %cst_149 = arith.constant dense<0.000000e+00> : vector<16x1xf32>
    %154 = tpu.matmul %151, %153, %cst_149 {dimension_numbers = #tpu.dot_dimension_numbers<[1], [0], [0], [1], [0, 0, 1, 1], [], []>} : vector<16x16xbf16>, vector<16x1xbf16>, vector<16x1xf32> -> vector<16x1xf32>
    %155 = arith.addf %147, %154 : vector<16x1xf32>
    %c0_150 = arith.constant 0 : index
    %c0_151 = arith.constant 0 : index
    %156 = vector.load %arg7[%c0_150, %c0_151] : memref<1x1xf32, #tpu.memory_space<vmem>>, vector<1x1xf32>
    %157 = vector.broadcast %156 : vector<1x1xf32> to vector<16x1xf32>
    %158 = arith.addf %155, %157 : vector<16x1xf32>
    %cst_152 = arith.constant 0.000000e+00 : f32
    %159 = vector.broadcast %cst_152 : f32 to vector<16x1xf32>
    %160 = arith.maximumf %158, %159 : vector<16x1xf32>
    %c0_153 = arith.constant 0 : index
    %c0_154 = arith.constant 0 : index
    %c0_155 = arith.constant 0 : index
    %161 = vector.load %arg8[%c0_153, %c0_154, %c0_155] : memref<1x16x1xf32, #tpu.memory_space<vmem>>, vector<1x16x1xf32>
    %162 = vector.shape_cast %161 : vector<1x16x1xf32> to vector<16x1xf32>
    %163 = vector.shape_cast %160 : vector<16x1xf32> to vector<1x16x1xf32>
    tpu.vector_store %arg8[%c0_153, %c0_154, %c0_155], %163 {strides = array<i32>} : memref<1x16x1xf32, #tpu.memory_space<vmem>>, vector<1x16x1xf32>,
    return
  }
  func.func @transform_0(%arg0: i32) -> (i32, i32, i32, i32, i32) {
    %c0_i32 = arith.constant 0 : i32
    %c0_i32_0 = arith.constant 0 : i32
    %c0_i32_1 = arith.constant 0 : i32
    %c0_i32_2 = arith.constant 0 : i32
    %c0_i32_3 = arith.constant 0 : i32
    return %arg0, %c0_i32, %c0_i32_0, %c0_i32_1, %c0_i32_2 : i32, i32, i32, i32, i32
  }
  func.func @transform_1(%arg0: i32) -> (i32, i32, i32) {
    %c0_i32 = arith.constant 0 : i32
    %c0_i32_0 = arith.constant 0 : i32
    %c0_i32_1 = arith.constant 0 : i32
    %c0_i32_2 = arith.constant 0 : i32
    return %c0_i32, %c0_i32_0, %c0_i32_1 : i32, i32, i32
  }
  func.func @transform_2(%arg0: i32) -> (i32, i32) {
    %c0_i32 = arith.constant 0 : i32
    %c0_i32_0 = arith.constant 0 : i32
    %c0_i32_1 = arith.constant 0 : i32
    return %c0_i32, %c0_i32_0 : i32, i32
  }
  func.func @transform_3(%arg0: i32) -> (i32, i32) {
    %c0_i32 = arith.constant 0 : i32
    %c0_i32_0 = arith.constant 0 : i32
    %c0_i32_1 = arith.constant 0 : i32
    return %c0_i32, %c0_i32_0 : i32, i32
  }
  func.func @transform_4(%arg0: i32) -> (i32, i32, i32) {
    %c0_i32 = arith.constant 0 : i32
    %c0_i32_0 = arith.constant 0 : i32
    %c0_i32_1 = arith.constant 0 : i32
    %c0_i32_2 = arith.constant 0 : i32
    return %c0_i32, %c0_i32_0, %c0_i32_1 : i32, i32, i32
  }
  func.func @transform_5(%arg0: i32) -> (i32, i32, i32) {
    %c0_i32 = arith.constant 0 : i32
    %c0_i32_0 = arith.constant 0 : i32
    %c0_i32_1 = arith.constant 0 : i32
    %c0_i32_2 = arith.constant 0 : i32
    return %c0_i32, %c0_i32_0, %c0_i32_1 : i32, i32, i32
  }
  func.func @transform_6(%arg0: i32) -> (i32, i32) {
    %c0_i32 = arith.constant 0 : i32
    %c0_i32_0 = arith.constant 0 : i32
    %c0_i32_1 = arith.constant 0 : i32
    return %c0_i32, %c0_i32_0 : i32, i32
  }
  func.func @transform_7(%arg0: i32) -> (i32, i32, i32) {
    %c0_i32 = arith.constant 0 : i32
    %c0_i32_0 = arith.constant 0 : i32
    %c0_i32_1 = arith.constant 0 : i32
    return %arg0, %c0_i32, %c0_i32_0 : i32, i32, i32
  }
}

</mosaic_0001>

<llo_original>
// kernel: forward.1
$region0: #{forward.1}
  #allocation0 [shape = 'u32[]', space=smem, size = 0x4, offset = 0x4, fixed_abs, tag = 'smem constant byte address 0x4 - core index']
  #allocation1 [shape = 'u32[144,128]{1,0:T(1,128)}', space=vmem, size = 0x12000, scoped, tag = 'internal scratch']
  #allocation2 [shape = 'f32[1,1]{1,0:T(1,128)S(1)}', space=vmem, size = 0x200, scoped, tag = 'scoped memory for forward.1']
  %s0 = inlined_call_operand.vmem [shape: f32[2,4,9,9,128], index: 0, kind: input, shape index: {}]
  %s1 = inlined_call_operand.vmem [shape: bf16[9,128,16], index: 1, kind: input, shape index: {}]
  %s2 = inlined_call_operand.vmem [shape: f32[1,16], index: 2, kind: input, shape index: {}]
  %s3 = inlined_call_operand.vmem [shape: f32[1,16], index: 3, kind: input, shape index: {}]
  %s4 = inlined_call_operand.vmem [shape: bf16[9,16,64], index: 4, kind: input, shape index: {}]
  %s5 = inlined_call_operand.vmem [shape: bf16[9,16,1], index: 5, kind: input, shape index: {}]
  %s6 = inlined_call_operand.<no memory space> [shape: f32[1,1], index: 6, kind: input, shape index: {}]
  %s7 = inlined_call_operand.vmem [shape: f32[2,16,1], index: 7, kind: output, shape index: {}]
  %s8 = sld [smem:[#allocation0]]
  $region61: #{forward.1} parent=0
    _
  %s10 = ssub.s32 1, %s8
  %s11 = scalar_select 0, %s10, %s8
  %v12 = vstv %s6
  %13 = vst [vmem:[#allocation2] sm:$0x1] %v12
  loop: start=0, step=1, limit=4
  $region2: #{forward.1} parent=0 // loop_pre_header
    _
  $region3: #{forward.1} parent=0 // loop_header
    %s15 = sphi 0, %s19
    %p16 = scmp.ge.s32.totalorder %s15, 4
    %s25 = sphi 0, %s27
    %s28 = sphi 0, %s25
    %s29 = sphi 0, %s28
    %s45 = sphi 0, %s29
    %s49 = sphi 0, %s49
    %s51 = sphi 0, %s49
    %s52 = sphi 0, %s51
    %s66 = sphi 0, %s52
    %s70 = sphi 0, %s70
    %s72 = sphi 0, %s70
    %s73 = sphi 0, %s72
    %s87 = sphi 0, %s73
    %s91 = sphi 0, %s91
    %s93 = sphi 0, %s91
    %s94 = sphi 0, %s93
    %s108 = sphi 0, %s94
    %s112 = sphi 0, %s112
    %s114 = sphi 0, %s112
    %s115 = sphi 0, %s114
    %s129 = sphi 0, %s115
    %s133 = sphi 0, %s133
    %s135 = sphi 0, %s133
    %s136 = sphi 0, %s135
    %s150 = sphi 0, %s136
    %s154 = sphi 0, %s154
    %s156 = sphi 0, %s154
    %s157 = sphi 0, %s156
    %s171 = sphi 0, %s157
    %s177 = sphi 0, %s179
    %s180 = sphi 0, %s177
    %s181 = sphi 0, %s180
    %s197 = sphi 0, %s181
  $region4: #{forward.1} parent=0 // loop_header_branch
    %18 = sbr.rel (%p16) target = $region8
  $region5: #{forward.1} parent=0 // loop_body
    %s20 = ssub.s32 %s15, 1
    %s21 = ssub.s32 %s15, 2
    %s22 = sadd.s32 %s15, 1
    %s23 = ssub.s32 %s15, %s22
    %p24 = scmp.eq.s32.totalorder %s23, 0
    %s26 = sadd.s32 %s25, 1
    %s27 = scalar_select %p24, %s25, %s26
    %p30 = pneg %p24
    %p31 = scmp.eq.s32.totalorder %s15, 1
    %p32 = por %p30, %p31
    %p33 = scmp.ne.s32.totalorder %s25, %s28
    %p34 = scmp.eq.s32.totalorder %s15, 0
    %p35 = por %p33, %p34
    %p36 = scmp.ne.s32.totalorder %s25, %s28
    %p37 = scmp.eq.s32.totalorder %s20, 1
    %p38 = por %p36, %p37
    %p39 = scmp.ne.s32.totalorder %s28, %s29
    %p40 = scmp.eq.s32.totalorder %s20, 0
    %p41 = por %p39, %p40
    %p42 = scmp.ne.s32.totalorder %s28, %s29
    %p43 = scmp.eq.s32.totalorder %s21, 1
    %p44 = por %p42, %p43
    %p46 = scmp.ne.s32.totalorder %s29, %s45
    %p47 = scmp.eq.s32.totalorder %s21, 0
    %p48 = por %p46, %p47
    %s50 = sadd.s32 %s49, 1
    %p53 = scmp.eq.s32.totalorder %s15, 1
    %p54 = scmp.ne.s32.totalorder %s49, %s51
    %p55 = scmp.eq.s32.totalorder %s15, 0
    %p56 = por %p54, %p55
    %p57 = scmp.ne.s32.totalorder %s49, %s51
    %p58 = scmp.eq.s32.totalorder %s20, 1
    %p59 = por %p57, %p58
    %p60 = scmp.ne.s32.totalorder %s51, %s52
    %p61 = scmp.eq.s32.totalorder %s20, 0
    %p62 = por %p60, %p61
    %p63 = scmp.ne.s32.totalorder %s51, %s52
    %p64 = scmp.eq.s32.totalorder %s21, 1
    %p65 = por %p63, %p64
    %p67 = scmp.ne.s32.totalorder %s52, %s66
    %p68 = scmp.eq.s32.totalorder %s21, 0
    %p69 = por %p67, %p68
    %s71 = sadd.s32 %s70, 1
    %p74 = scmp.eq.s32.totalorder %s15, 1
    %p75 = scmp.ne.s32.totalorder %s70, %s72
    %p76 = scmp.eq.s32.totalorder %s15, 0
    %p77 = por %p75, %p76
    %p78 = scmp.ne.s32.totalorder %s70, %s72
    %p79 = scmp.eq.s32.totalorder %s20, 1
    %p80 = por %p78, %p79
    %p81 = scmp.ne.s32.totalorder %s72, %s73
    %p82 = scmp.eq.s32.totalorder %s20, 0
    %p83 = por %p81, %p82
    %p84 = scmp.ne.s32.totalorder %s72, %s73
    %p85 = scmp.eq.s32.totalorder %s21, 1
    %p86 = por %p84, %p85
    %p88 = scmp.ne.s32.totalorder %s73, %s87
    %p89 = scmp.eq.s32.totalorder %s21, 0
    %p90 = por %p88, %p89
    %s92 = sadd.s32 %s91, 1
    %p95 = scmp.eq.s32.totalorder %s15, 1
    %p96 = scmp.ne.s32.totalorder %s91, %s93
    %p97 = scmp.eq.s32.totalorder %s15, 0
    %p98 = por %p96, %p97
    %p99 = scmp.ne.s32.totalorder %s91, %s93
    %p100 = scmp.eq.s32.totalorder %s20, 1
    %p101 = por %p99, %p100
    %p102 = scmp.ne.s32.totalorder %s93, %s94
    %p103 = scmp.eq.s32.totalorder %s20, 0
    %p104 = por %p102, %p103
    %p105 = scmp.ne.s32.totalorder %s93, %s94
    %p106 = scmp.eq.s32.totalorder %s21, 1
    %p107 = por %p105, %p106
    %p109 = scmp.ne.s32.totalorder %s94, %s108
    %p110 = scmp.eq.s32.totalorder %s21, 0
    %p111 = por %p109, %p110
    %s113 = sadd.s32 %s112, 1
    %p116 = scmp.eq.s32.totalorder %s15, 1
    %p117 = scmp.ne.s32.totalorder %s112, %s114
    %p118 = scmp.eq.s32.totalorder %s15, 0
    %p119 = por %p117, %p118
    %p120 = scmp.ne.s32.totalorder %s112, %s114
    %p121 = scmp.eq.s32.totalorder %s20, 1
    %p122 = por %p120, %p121
    %p123 = scmp.ne.s32.totalorder %s114, %s115
    %p124 = scmp.eq.s32.totalorder %s20, 0
    %p125 = por %p123, %p124
    %p126 = scmp.ne.s32.totalorder %s114, %s115
    %p127 = scmp.eq.s32.totalorder %s21, 1
    %p128 = por %p126, %p127
    %p130 = scmp.ne.s32.totalorder %s115, %s129
    %p131 = scmp.eq.s32.totalorder %s21, 0
    %p132 = por %p130, %p131
    %s134 = sadd.s32 %s133, 1
    %p137 = scmp.eq.s32.totalorder %s15, 1
    %p138 = scmp.ne.s32.totalorder %s133, %s135
    %p139 = scmp.eq.s32.totalorder %s15, 0
    %p140 = por %p138, %p139
    %p141 = scmp.ne.s32.totalorder %s133, %s135
    %p142 = scmp.eq.s32.totalorder %s20, 1
    %p143 = por %p141, %p142
    %p144 = scmp.ne.s32.totalorder %s135, %s136
    %p145 = scmp.eq.s32.totalorder %s20, 0
    %p146 = por %p144, %p145
    %p147 = scmp.ne.s32.totalorder %s135, %s136
    %p148 = scmp.eq.s32.totalorder %s21, 1
    %p149 = por %p147, %p148
    %p151 = scmp.ne.s32.totalorder %s136, %s150
    %p152 = scmp.eq.s32.totalorder %s21, 0
    %p153 = por %p151, %p152
    %s155 = sadd.s32 %s154, 1
    %p158 = scmp.eq.s32.totalorder %s15, 1
    %p159 = scmp.ne.s32.totalorder %s154, %s156
    %p160 = scmp.eq.s32.totalorder %s15, 0
    %p161 = por %p159, %p160
    %p162 = scmp.ne.s32.totalorder %s154, %s156
    %p163 = scmp.eq.s32.totalorder %s20, 1
    %p164 = por %p162, %p163
    %p165 = scmp.ne.s32.totalorder %s156, %s157
    %p166 = scmp.eq.s32.totalorder %s20, 0
    %p167 = por %p165, %p166
    %p168 = scmp.ne.s32.totalorder %s156, %s157
    %p169 = scmp.eq.s32.totalorder %s21, 1
    %p170 = por %p168, %p169
    %p172 = scmp.ne.s32.totalorder %s157, %s171
    %p173 = scmp.eq.s32.totalorder %s21, 0
    %p174 = por %p172, %p173
    %s175 = ssub.s32 %s15, %s22
    %p176 = scmp.eq.s32.totalorder %s175, 0
    %s178 = sadd.s32 %s177, 1
    %s179 = scalar_select %p176, %s177, %s178
    %p182 = pneg %p176
    %p183 = scmp.eq.s32.totalorder %s15, 1
    %p184 = por %p182, %p183
    %p185 = scmp.ne.s32.totalorder %s177, %s180
    %p186 = scmp.eq.s32.totalorder %s15, 0
    %p187 = por %p185, %p186
    %p188 = scmp.ne.s32.totalorder %s177, %s180
    %p189 = scmp.eq.s32.totalorder %s20, 1
    %p190 = por %p188, %p189
    %p191 = scmp.ne.s32.totalorder %s180, %s181
    %p192 = scmp.eq.s32.totalorder %s20, 0
    %p193 = por %p191, %p192
    %p194 = scmp.ne.s32.totalorder %s180, %s181
    %p195 = scmp.eq.s32.totalorder %s21, 1
    %p196 = por %p194, %p195
    %p198 = scmp.ne.s32.totalorder %s181, %s197
    %p199 = scmp.eq.s32.totalorder %s21, 0
    %p200 = por %p198, %p199
    %p201 = scmp.le.s32.totalorder 1, %s15
    %p202 = scmp.lt.s32.totalorder %s15, 3
    %p203 = pnand %p201, %p202
    %p204 = pneg %p203
    // Predicated region
    $region9: #{forward.1} parent=5 // pred_check
      _
    $region10: #{forward.1} parent=5 // pred_check_branch
      %206 = sbr.rel (%p203) target = $region12
    $region11: #{forward.1} parent=5 // pred_region
      %s207 = ssub.s32 %s15, 1
      // Predicated region
      $region13: #{forward.1} parent=11 // pred_check
        %p208 = pneg %p62
      $region14: #{forward.1} parent=11 // pred_check_branch
        %210 = sbr.rel (%p208) target = $region16
      $region15: #{forward.1} parent=11 // pred_region
        _
      $region16: #{forward.1} parent=11 // pred_fallthru
        _
      // Predicated region
      $region17: #{forward.1} parent=11 // pred_check
        %p211 = pneg %p83
      $region18: #{forward.1} parent=11 // pred_check_branch
        %213 = sbr.rel (%p211) target = $region20
      $region19: #{forward.1} parent=11 // pred_region
        _
      $region20: #{forward.1} parent=11 // pred_fallthru
        _
      // Predicated region
      $region21: #{forward.1} parent=11 // pred_check
        %p214 = pneg %p104
      $region22: #{forward.1} parent=11 // pred_check_branch
        %216 = sbr.rel (%p214) target = $region24
      $region23: #{forward.1} parent=11 // pred_region
        _
      $region24: #{forward.1} parent=11 // pred_fallthru
        _
      // Predicated region
      $region25: #{forward.1} parent=11 // pred_check
        %p217 = pneg %p125
      $region26: #{forward.1} parent=11 // pred_check_branch
        %219 = sbr.rel (%p217) target = $region28
      $region27: #{forward.1} parent=11 // pred_region
        _
      $region28: #{forward.1} parent=11 // pred_fallthru
        _
      // Predicated region
      $region29: #{forward.1} parent=11 // pred_check
        %p220 = pneg %p146
      $region30: #{forward.1} parent=11 // pred_check_branch
        %222 = sbr.rel (%p220) target = $region32
      $region31: #{forward.1} parent=11 // pred_region
        _
      $region32: #{forward.1} parent=11 // pred_fallthru
        _
      // Predicated region
      $region33: #{forward.1} parent=11 // pred_check
        %p223 = pneg %p167
      $region34: #{forward.1} parent=11 // pred_check_branch
        %225 = sbr.rel (%p223) target = $region36
      $region35: #{forward.1} parent=11 // pred_region
        _
      $region36: #{forward.1} parent=11 // pred_fallthru
        _
    $region12: #{forward.1} parent=5 // pred_fallthru
      _
    %p226 = scmp.lt.s32.totalorder %s15, 2
    // Predicated region
    $region37: #{forward.1} parent=5 // pred_check
      %p227 = pneg %p226
    $region38: #{forward.1} parent=5 // pred_check_branch
      %229 = sbr.rel (%p227) target = $region40
    $region39: #{forward.1} parent=5 // pred_region
      // Predicated region
      $region41: #{forward.1} parent=39 // pred_check
        %p230 = pneg %p35
      $region42: #{forward.1} parent=39 // pred_check_branch
        %232 = sbr.rel (%p230) target = $region44
      $region43: #{forward.1} parent=39 // pred_region
        %p233 = scmp.lt.s32.totalorder %s15, 1
        %s234 = scalar_select %p233, %s15, 1
        %s235 = smul.addr %s234, 72
        %s236 = smul.addr %s235, 8
        %s237 = scalar_lea.vmem %s0, %s236
      $region44: #{forward.1} parent=39 // pred_fallthru
        _
    $region40: #{forward.1} parent=5 // pred_fallthru
      _
    %p238 = scmp.le.s32.totalorder 1, %s15
    %p239 = scmp.lt.s32.totalorder %s15, 3
    %p240 = pnand %p238, %p239
    %p241 = pneg %p240
    // Predicated region
    $region45: #{forward.1} parent=5 // pred_check
      _
    $region46: #{forward.1} parent=5 // pred_check_branch
      %243 = sbr.rel (%p240) target = $region48
    $region47: #{forward.1} parent=5 // pred_region
      %s244 = ssub.s32 %s15, 1
      %p245 = scmp.lt.s32.totalorder %s20, 1
      %s246 = scalar_select %p245, %s20, 1
      %s247 = smul.addr %s246, 72
      %s248 = smul.addr %s247, 8
      %s249 = scalar_lea.vmem %s0, %s248
      %p250 = pneg %p41
      %p251 = pneg %p38
      %p252 = pneg %p62
      %p253 = pneg %p59
      %p254 = pneg %p83
      %p255 = pneg %p80
      %p256 = pneg %p104
      %p257 = pneg %p101
      %p258 = pneg %p125
      %p259 = pneg %p122
      %p260 = pneg %p146
      %p261 = pneg %p143
      %p262 = pneg %p167
      %p263 = pneg %p164
      %p264 = pneg %p193
      %p265 = pneg %p190
      %p266 = scmp.lt.s32.totalorder %s20, 1
      %s267 = scalar_select %p266, %s20, 1
      %s268 = smul.addr %s267, 2
      %s269 = smul.addr %s268, 8
      %s270 = scalar_lea.vmem %s7, %s269
      %p271 = scmp.lt.s32.totalorder %s20, 1
      %s272 = scalar_select %p271, %s20, 1
      %s273 = smul.addr %s272, 72
      %s274 = smul.addr %s273, 8
      %s275 = scalar_lea.vmem %s0, %s274
      %p276 = scmp.lt.s32.totalorder %s20, 1
      %s277 = scalar_select %p276, %s20, 1
      %s278 = smul.addr %s277, 2
      %s279 = smul.addr %s278, 8
      %s280 = scalar_lea.vmem %s7, %s279
      %v282 = vld [vmem:[%s275] sm:$0xff]
      %v283 = vld [vmem:[%s275 + $0x10] sm:$0xff]
      %v284 = vld [vmem:[%s275 + $0x20] sm:$0xff]
      %v285 = vld [vmem:[%s275 + $0x30] sm:$0xff]
      %v286 = vld [vmem:[%s275 + $0x40] sm:$0xff]
      %v287 = vld [vmem:[%s275 + $0x50] sm:$0xff]
      %v288 = vld [vmem:[%s275 + $0x60] sm:$0xff]
      %v289 = vld [vmem:[%s275 + $0x70] sm:$0xff]
      %v290 = vpack.c.bf16 %v283, %v282
      %v291 = vpack.c.bf16 %v285, %v284
      %v292 = vpack.c.bf16 %v287, %v286
      %v293 = vpack.c.bf16 %v289, %v288
      %v294 = vld [vmem:[%s1] sm:$0xf]
      %v295 = vld [vmem:[%s1 + $0x4] sm:$0xf]
      %v296 = vld [vmem:[%s1 + $0x8] sm:$0xf]
      %v297 = vld [vmem:[%s1 + $0xc] sm:$0xf]
      %v298 = vld [vmem:[%s1 + $0x10] sm:$0xf]
      %v299 = vld [vmem:[%s1 + $0x14] sm:$0xf]
      %v300 = vld [vmem:[%s1 + $0x18] sm:$0xf]
      %v301 = vld [vmem:[%s1 + $0x1c] sm:$0xf]
      %v302 = vld [vmem:[%s1 + $0x20] sm:$0xf]
      %v303 = vld [vmem:[%s1 + $0x24] sm:$0xf]
      %v304 = vld [vmem:[%s1 + $0x28] sm:$0xf]
      %v305 = vld [vmem:[%s1 + $0x2c] sm:$0xf]
      %v306 = vld [vmem:[%s1 + $0x30] sm:$0xf]
      %v307 = vld [vmem:[%s1 + $0x34] sm:$0xf]
      %v308 = vld [vmem:[%s1 + $0x38] sm:$0xf]
      %v309 = vld [vmem:[%s1 + $0x3c] sm:$0xf]
      %s310 = scalar_lea.vmem %s275, 144
      %v311 = vld [vmem:[%s310] sm:$0xff]
      %v312 = vld [vmem:[%s310 + $0x10] sm:$0xff]
      %v313 = vld [vmem:[%s310 + $0x20] sm:$0xff]
      %v314 = vld [vmem:[%s310 + $0x30] sm:$0xff]
      %v315 = vld [vmem:[%s310 + $0x40] sm:$0xff]
      %v316 = vld [vmem:[%s310 + $0x50] sm:$0xff]
      %v317 = vld [vmem:[%s310 + $0x60] sm:$0xff]
      %v318 = vld [vmem:[%s310 + $0x70] sm:$0xff]
      %v319 = vpack.c.bf16 %v312, %v311
      %v320 = vpack.c.bf16 %v314, %v313
      %v321 = vpack.c.bf16 %v316, %v315
      %v322 = vpack.c.bf16 %v318, %v317
      %s323 = scalar_lea.vmem %s1, 64
      %v324 = vld [vmem:[%s323] sm:$0xf]
      %v325 = vld [vmem:[%s323 + $0x4] sm:$0xf]
      %v326 = vld [vmem:[%s323 + $0x8] sm:$0xf]
      %v327 = vld [vmem:[%s323 + $0xc] sm:$0xf]
      %v328 = vld [vmem:[%s323 + $0x10] sm:$0xf]
      %v329 = vld [vmem:[%s323 + $0x14] sm:$0xf]
      %v330 = vld [vmem:[%s323 + $0x18] sm:$0xf]
      %v331 = vld [vmem:[%s323 + $0x1c] sm:$0xf]
      %v332 = vld [vmem:[%s323 + $0x20] sm:$0xf]
      %v333 = vld [vmem:[%s323 + $0x24] sm:$0xf]
      %v334 = vld [vmem:[%s323 + $0x28] sm:$0xf]
      %v335 = vld [vmem:[%s323 + $0x2c] sm:$0xf]
      %v336 = vld [vmem:[%s323 + $0x30] sm:$0xf]
      %v337 = vld [vmem:[%s323 + $0x34] sm:$0xf]
      %v338 = vld [vmem:[%s323 + $0x38] sm:$0xf]
      %v339 = vld [vmem:[%s323 + $0x3c] sm:$0xf]
      %v356 = vunpack.c.l.b16 %v324
      %v357 = vunpack.c.l.b16 %v325
      %v358 = vunpack.c.l.b16 %v326
      %v359 = vunpack.c.l.b16 %v327
      %v360 = vunpack.c.l.b16 %v328
      %v361 = vunpack.c.l.b16 %v329
      %v362 = vunpack.c.l.b16 %v330
      %v363 = vunpack.c.l.b16 %v331
      %v364 = vunpack.c.l.b16 %v332
      %v365 = vunpack.c.l.b16 %v333
      %v366 = vunpack.c.l.b16 %v334
      %v367 = vunpack.c.l.b16 %v335
      %v368 = vunpack.c.l.b16 %v336
      %v369 = vunpack.c.l.b16 %v337
      %v370 = vunpack.c.l.b16 %v338
      %v371 = vunpack.c.l.b16 %v339
      %v372 = vpack.c.b16 %v357, %v356
      %v373 = vpack.c.b16 %v359, %v358
      %v374 = vpack.c.b16 %v361, %v360
      %v375 = vpack.c.b16 %v363, %v362
      %v376 = vpack.c.b16 %v365, %v364
      %v377 = vpack.c.b16 %v367, %v366
      %v378 = vpack.c.b16 %v369, %v368
      %v379 = vpack.c.b16 %v371, %v370
      %388 = vmatprep.subr.bf16.mxu0 0
      %389 = vmatpush1.bf16.msra.mxu0 %v379
      %390 = vmatprep.subr.bf16.mxu0 0
      %391 = vmatpush1.bf16.msra.mxu0 %v378
      %392 = vmatprep.subr.bf16.mxu0 0
      %393 = vmatpush1.bf16.msra.mxu0 %v377
      %394 = vmatprep.subr.bf16.mxu0 0
      %395 = vmatpush1.bf16.msra.mxu0 %v376
      %396 = vmatprep.subr.bf16.mxu0 0
      %397 = vmatpush1.bf16.msra.mxu0 %v375
      %398 = vmatprep.subr.bf16.mxu0 0
      %399 = vmatpush1.bf16.msra.mxu0 %v374
      %400 = vmatprep.subr.bf16.mxu0 0
      %401 = vmatpush1.bf16.msra.mxu0 %v373
      %402 = vmatprep.subr.bf16.mxu0 0
      %403 = vmatpush1.bf16.msra.mxu0 %v372
      %404 = vmatprep.subr.bf16.mxu0 0
      %405 = vmatpush2.bf16.msra.mxu0 0
      %406 = vmatprep.subr.bf16.mxu0 0
      %407 = vmatpush2.bf16.msra.mxu0 0
      %408 = vmatprep.subr.bf16.mxu0 0
      %409 = vmatpush2.bf16.msra.mxu0 0
      %410 = vmatprep.subr.bf16.mxu0 0
      %411 = vmatpush2.bf16.msra.mxu0 0
      %412 = vmatprep.subr.bf16.mxu0 0
      %413 = vmatpush2.bf16.msra.mxu0 0
      %414 = vmatprep.subr.bf16.mxu0 0
      %415 = vmatpush2.bf16.msra.mxu0 0
      %416 = vmatprep.subr.bf16.mxu0 0
      %417 = vmatpush2.bf16.msra.mxu0 0
      %418 = vmatprep.subr.bf16.mxu0 0
      %419 = vmatpush2.bf16.msra.mxu0 0
      %420 = vmatprep.mubr.bf16.mxu0 0
      %421 = vmatmul.mubr.bf16.gmra.mxu0 %v319
      %v422 = vpop.f32.mrf.mxu0
      %v423 = vadd.f32 0.0, %v422
      %v424 = vpop.f32.mrf.mxu0
      %v425 = vpop.f32.mrf.mxu0
      %v426 = vadd.f32 0.0, %v425
      %v427 = vpop.f32.mrf.mxu0
      %428 = vmatprep.mubr.bf16.mxu0 0
      %429 = vmatmul.mubr.bf16.gmra.mxu0 %v320
      %v430 = vpop.f32.mrf.mxu0
      %v431 = vadd.f32 0.0, %v430
      %v432 = vpop.f32.mrf.mxu0
      %v433 = vpop.f32.mrf.mxu0
      %v434 = vadd.f32 0.0, %v433
      %v435 = vpop.f32.mrf.mxu0
      %436 = vmatprep.mubr.bf16.mxu0 0
      %437 = vmatmul.mubr.bf16.gmra.mxu0 %v321
      %v438 = vpop.f32.mrf.mxu0
      %v439 = vadd.f32 0.0, %v438
      %v440 = vpop.f32.mrf.mxu0
      %v441 = vpop.f32.mrf.mxu0
      %v442 = vadd.f32 0.0, %v441
      %v443 = vpop.f32.mrf.mxu0
      %444 = vmatprep.mubr.bf16.mxu0 0
      %445 = vmatmul.mubr.bf16.gmra.mxu0 %v322
      %v446 = vpop.f32.mrf.mxu0
      %v447 = vadd.f32 0.0, %v446
      %v448 = vpop.f32.mrf.mxu0
      %v449 = vpop.f32.mrf.mxu0
      %v450 = vadd.f32 0.0, %v449
      %v451 = vpop.f32.mrf.mxu0
      %452 = vdwg.mxu0
      %v469 = vunpack.c.l.b16 %v294
      %v470 = vunpack.c.l.b16 %v295
      %v471 = vunpack.c.l.b16 %v296
      %v472 = vunpack.c.l.b16 %v297
      %v473 = vunpack.c.l.b16 %v298
      %v474 = vunpack.c.l.b16 %v299
      %v475 = vunpack.c.l.b16 %v300
      %v476 = vunpack.c.l.b16 %v301
      %v477 = vunpack.c.l.b16 %v302
      %v478 = vunpack.c.l.b16 %v303
      %v479 = vunpack.c.l.b16 %v304
      %v480 = vunpack.c.l.b16 %v305
      %v481 = vunpack.c.l.b16 %v306
      %v482 = vunpack.c.l.b16 %v307
      %v483 = vunpack.c.l.b16 %v308
      %v484 = vunpack.c.l.b16 %v309
      %v485 = vpack.c.b16 %v470, %v469
      %v486 = vpack.c.b16 %v472, %v471
      %v487 = vpack.c.b16 %v474, %v473
      %v488 = vpack.c.b16 %v476, %v475
      %v489 = vpack.c.b16 %v478, %v477
      %v490 = vpack.c.b16 %v480, %v479
      %v491 = vpack.c.b16 %v482, %v481
      %v492 = vpack.c.b16 %v484, %v483
      %501 = vmatprep.subr.bf16.mxu0 0
      %502 = vmatpush1.bf16.msra.mxu0 %v492
      %503 = vmatprep.subr.bf16.mxu0 0
      %504 = vmatpush1.bf16.msra.mxu0 %v491
      %505 = vmatprep.subr.bf16.mxu0 0
      %506 = vmatpush1.bf16.msra.mxu0 %v490
      %507 = vmatprep.subr.bf16.mxu0 0
      %508 = vmatpush1.bf16.msra.mxu0 %v489
      %509 = vmatprep.subr.bf16.mxu0 0
      %510 = vmatpush1.bf16.msra.mxu0 %v488
      %511 = vmatprep.subr.bf16.mxu0 0
      %512 = vmatpush1.bf16.msra.mxu0 %v487
      %513 = vmatprep.subr.bf16.mxu0 0
      %514 = vmatpush1.bf16.msra.mxu0 %v486
      %515 = vmatprep.subr.bf16.mxu0 0
      %516 = vmatpush1.bf16.msra.mxu0 %v485
      %517 = vmatprep.subr.bf16.mxu0 0
      %518 = vmatpush2.bf16.msra.mxu0 0
      %519 = vmatprep.subr.bf16.mxu0 0
      %520 = vmatpush2.bf16.msra.mxu0 0
      %521 = vmatprep.subr.bf16.mxu0 0
      %522 = vmatpush2.bf16.msra.mxu0 0
      %523 = vmatprep.subr.bf16.mxu0 0
      %524 = vmatpush2.bf16.msra.mxu0 0
      %525 = vmatprep.subr.bf16.mxu0 0
      %526 = vmatpush2.bf16.msra.mxu0 0
      %527 = vmatprep.subr.bf16.mxu0 0
      %528 = vmatpush2.bf16.msra.mxu0 0
      %529 = vmatprep.subr.bf16.mxu0 0
      %530 = vmatpush2.bf16.msra.mxu0 0
      %531 = vmatprep.subr.bf16.mxu0 0
      %532 = vmatpush2.bf16.msra.mxu0 0
      %533 = vmatprep.mubr.bf16.mxu0 0
      %534 = vmatmul.mubr.bf16.gmra.mxu0 %v290
      %v535 = vpop.f32.mrf.mxu0
      %v536 = vadd.f32 %v423, %v535
      %v537 = vpop.f32.mrf.mxu0
      %v538 = vpop.f32.mrf.mxu0
      %v539 = vadd.f32 %v426, %v538
      %v540 = vpop.f32.mrf.mxu0
      %541 = vmatprep.mubr.bf16.mxu0 0
      %542 = vmatmul.mubr.bf16.gmra.mxu0 %v291
      %v543 = vpop.f32.mrf.mxu0
      %v544 = vadd.f32 %v431, %v543
      %v545 = vpop.f32.mrf.mxu0
      %v546 = vpop.f32.mrf.mxu0
      %v547 = vadd.f32 %v434, %v546
      %v548 = vpop.f32.mrf.mxu0
      %549 = vmatprep.mubr.bf16.mxu0 0
      %550 = vmatmul.mubr.bf16.gmra.mxu0 %v292
      %v551 = vpop.f32.mrf.mxu0
      %v552 = vadd.f32 %v439, %v551
      %v553 = vpop.f32.mrf.mxu0
      %v554 = vpop.f32.mrf.mxu0
      %v555 = vadd.f32 %v442, %v554
      %v556 = vpop.f32.mrf.mxu0
      %557 = vmatprep.mubr.bf16.mxu0 0
      %558 = vmatmul.mubr.bf16.gmra.mxu0 %v293
      %v559 = vpop.f32.mrf.mxu0
      %v560 = vadd.f32 %v447, %v559
      %v561 = vpop.f32.mrf.mxu0
      %v562 = vpop.f32.mrf.mxu0
      %v563 = vadd.f32 %v450, %v562
      %v564 = vpop.f32.mrf.mxu0
      %565 = vdwg.mxu0
      %v566 = vld [vmem:[%s275 + $0x1] sm:$0xff]
      %v567 = vld [vmem:[%s275 + $0x11] sm:$0xff]
      %v568 = vld [vmem:[%s275 + $0x21] sm:$0xff]
      %v569 = vld [vmem:[%s275 + $0x31] sm:$0xff]
      %v570 = vld [vmem:[%s275 + $0x41] sm:$0xff]
      %v571 = vld [vmem:[%s275 + $0x51] sm:$0xff]
      %v572 = vld [vmem:[%s275 + $0x61] sm:$0xff]
      %v573 = vld [vmem:[%s275 + $0x71] sm:$0xff]
      %v574 = vpack.c.bf16 %v567, %v566
      %v575 = vpack.c.bf16 %v569, %v568
      %v576 = vpack.c.bf16 %v571, %v570
      %v577 = vpack.c.bf16 %v573, %v572
      %s578 = scalar_lea.vmem %s1, 128
      %v579 = vld [vmem:[%s578] sm:$0xf]
      %v580 = vld [vmem:[%s578 + $0x4] sm:$0xf]
      %v581 = vld [vmem:[%s578 + $0x8] sm:$0xf]
      %v582 = vld [vmem:[%s578 + $0xc] sm:$0xf]
      %v583 = vld [vmem:[%s578 + $0x10] sm:$0xf]
      %v584 = vld [vmem:[%s578 + $0x14] sm:$0xf]
      %v585 = vld [vmem:[%s578 + $0x18] sm:$0xf]
      %v586 = vld [vmem:[%s578 + $0x1c] sm:$0xf]
      %v587 = vld [vmem:[%s578 + $0x20] sm:$0xf]
      %v588 = vld [vmem:[%s578 + $0x24] sm:$0xf]
      %v589 = vld [vmem:[%s578 + $0x28] sm:$0xf]
      %v590 = vld [vmem:[%s578 + $0x2c] sm:$0xf]
      %v591 = vld [vmem:[%s578 + $0x30] sm:$0xf]
      %v592 = vld [vmem:[%s578 + $0x34] sm:$0xf]
      %v593 = vld [vmem:[%s578 + $0x38] sm:$0xf]
      %v594 = vld [vmem:[%s578 + $0x3c] sm:$0xf]
      %v611 = vunpack.c.l.b16 %v579
      %v612 = vunpack.c.l.b16 %v580
      %v613 = vunpack.c.l.b16 %v581
      %v614 = vunpack.c.l.b16 %v582
      %v615 = vunpack.c.l.b16 %v583
      %v616 = vunpack.c.l.b16 %v584
      %v617 = vunpack.c.l.b16 %v585
      %v618 = vunpack.c.l.b16 %v586
      %v619 = vunpack.c.l.b16 %v587
      %v620 = vunpack.c.l.b16 %v588
      %v621 = vunpack.c.l.b16 %v589
      %v622 = vunpack.c.l.b16 %v590
      %v623 = vunpack.c.l.b16 %v591
      %v624 = vunpack.c.l.b16 %v592
      %v625 = vunpack.c.l.b16 %v593
      %v626 = vunpack.c.l.b16 %v594
      %v627 = vpack.c.b16 %v612, %v611
      %v628 = vpack.c.b16 %v614, %v613
      %v629 = vpack.c.b16 %v616, %v615
      %v630 = vpack.c.b16 %v618, %v617
      %v631 = vpack.c.b16 %v620, %v619
      %v632 = vpack.c.b16 %v622, %v621
      %v633 = vpack.c.b16 %v624, %v623
      %v634 = vpack.c.b16 %v626, %v625
      %643 = vmatprep.subr.bf16.mxu0 0
      %644 = vmatpush1.bf16.msra.mxu0 %v634
      %645 = vmatprep.subr.bf16.mxu0 0
      %646 = vmatpush1.bf16.msra.mxu0 %v633
      %647 = vmatprep.subr.bf16.mxu0 0
      %648 = vmatpush1.bf16.msra.mxu0 %v632
      %649 = vmatprep.subr.bf16.mxu0 0
      %650 = vmatpush1.bf16.msra.mxu0 %v631
      %651 = vmatprep.subr.bf16.mxu0 0
      %652 = vmatpush1.bf16.msra.mxu0 %v630
      %653 = vmatprep.subr.bf16.mxu0 0
      %654 = vmatpush1.bf16.msra.mxu0 %v629
      %655 = vmatprep.subr.bf16.mxu0 0
      %656 = vmatpush1.bf16.msra.mxu0 %v628
      %657 = vmatprep.subr.bf16.mxu0 0
      %658 = vmatpush1.bf16.msra.mxu0 %v627
      %659 = vmatprep.subr.bf16.mxu0 0
      %660 = vmatpush2.bf16.msra.mxu0 0
      %661 = vmatprep.subr.bf16.mxu0 0
      %662 = vmatpush2.bf16.msra.mxu0 0
      %663 = vmatprep.subr.bf16.mxu0 0
      %664 = vmatpush2.bf16.msra.mxu0 0
      %665 = vmatprep.subr.bf16.mxu0 0
      %666 = vmatpush2.bf16.msra.mxu0 0
      %667 = vmatprep.subr.bf16.mxu0 0
      %668 = vmatpush2.bf16.msra.mxu0 0
      %669 = vmatprep.subr.bf16.mxu0 0
      %670 = vmatpush2.bf16.msra.mxu0 0
      %671 = vmatprep.subr.bf16.mxu0 0
      %672 = vmatpush2.bf16.msra.mxu0 0
      %673 = vmatprep.subr.bf16.mxu0 0
      %674 = vmatpush2.bf16.msra.mxu0 0
      %675 = vmatprep.mubr.bf16.mxu0 0
      %676 = vmatmul.mubr.bf16.gmra.mxu0 %v574
      %v677 = vpop.f32.mrf.mxu0
      %v678 = vadd.f32 0.0, %v677
      %v679 = vpop.f32.mrf.mxu0
      %v680 = vpop.f32.mrf.mxu0
      %v681 = vadd.f32 0.0, %v680
      %v682 = vpop.f32.mrf.mxu0
      %683 = vmatprep.mubr.bf16.mxu0 0
      %684 = vmatmul.mubr.bf16.gmra.mxu0 %v575
      %v685 = vpop.f32.mrf.mxu0
      %v686 = vadd.f32 0.0, %v685
      %v687 = vpop.f32.mrf.mxu0
      %v688 = vpop.f32.mrf.mxu0
      %v689 = vadd.f32 0.0, %v688
      %v690 = vpop.f32.mrf.mxu0
      %691 = vmatprep.mubr.bf16.mxu0 0
      %692 = vmatmul.mubr.bf16.gmra.mxu0 %v576
      %v693 = vpop.f32.mrf.mxu0
      %v694 = vadd.f32 0.0, %v693
      %v695 = vpop.f32.mrf.mxu0
      %v696 = vpop.f32.mrf.mxu0
      %v697 = vadd.f32 0.0, %v696
      %v698 = vpop.f32.mrf.mxu0
      %699 = vmatprep.mubr.bf16.mxu0 0
      %700 = vmatmul.mubr.bf16.gmra.mxu0 %v577
      %v701 = vpop.f32.mrf.mxu0
      %v702 = vadd.f32 0.0, %v701
      %v703 = vpop.f32.mrf.mxu0
      %v704 = vpop.f32.mrf.mxu0
      %v705 = vadd.f32 0.0, %v704
      %v706 = vpop.f32.mrf.mxu0
      %707 = vdwg.mxu0
      %v708 = vadd.f32 %v536, %v678
      %v709 = vadd.f32 %v539, %v681
      %v710 = vadd.f32 %v544, %v686
      %v711 = vadd.f32 %v547, %v689
      %v712 = vadd.f32 %v552, %v694
      %v713 = vadd.f32 %v555, %v697
      %v714 = vadd.f32 %v560, %v702
      %v715 = vadd.f32 %v563, %v705
      %s716 = scalar_lea.vmem %s275, 288
      %v717 = vld [vmem:[%s716] sm:$0xff]
      %v718 = vld [vmem:[%s716 + $0x10] sm:$0xff]
      %v719 = vld [vmem:[%s716 + $0x20] sm:$0xff]
      %v720 = vld [vmem:[%s716 + $0x30] sm:$0xff]
      %v721 = vld [vmem:[%s716 + $0x40] sm:$0xff]
      %v722 = vld [vmem:[%s716 + $0x50] sm:$0xff]
      %v723 = vld [vmem:[%s716 + $0x60] sm:$0xff]
      %v724 = vld [vmem:[%s716 + $0x70] sm:$0xff]
      %v725 = vpack.c.bf16 %v718, %v717
      %v726 = vpack.c.bf16 %v720, %v719
      %v727 = vpack.c.bf16 %v722, %v721
      %v728 = vpack.c.bf16 %v724, %v723
      %s729 = scalar_lea.vmem %s1, 192
      %v730 = vld [vmem:[%s729] sm:$0xf]
      %v731 = vld [vmem:[%s729 + $0x4] sm:$0xf]
      %v732 = vld [vmem:[%s729 + $0x8] sm:$0xf]
      %v733 = vld [vmem:[%s729 + $0xc] sm:$0xf]
      %v734 = vld [vmem:[%s729 + $0x10] sm:$0xf]
      %v735 = vld [vmem:[%s729 + $0x14] sm:$0xf]
      %v736 = vld [vmem:[%s729 + $0x18] sm:$0xf]
      %v737 = vld [vmem:[%s729 + $0x1c] sm:$0xf]
      %v738 = vld [vmem:[%s729 + $0x20] sm:$0xf]
      %v739 = vld [vmem:[%s729 + $0x24] sm:$0xf]
      %v740 = vld [vmem:[%s729 + $0x28] sm:$0xf]
      %v741 = vld [vmem:[%s729 + $0x2c] sm:$0xf]
      %v742 = vld [vmem:[%s729 + $0x30] sm:$0xf]
      %v743 = vld [vmem:[%s729 + $0x34] sm:$0xf]
      %v744 = vld [vmem:[%s729 + $0x38] sm:$0xf]
      %v745 = vld [vmem:[%s729 + $0x3c] sm:$0xf]
      %v762 = vunpack.c.l.b16 %v730
      %v763 = vunpack.c.l.b16 %v731
      %v764 = vunpack.c.l.b16 %v732
      %v765 = vunpack.c.l.b16 %v733
      %v766 = vunpack.c.l.b16 %v734
      %v767 = vunpack.c.l.b16 %v735
      %v768 = vunpack.c.l.b16 %v736
      %v769 = vunpack.c.l.b16 %v737
      %v770 = vunpack.c.l.b16 %v738
      %v771 = vunpack.c.l.b16 %v739
      %v772 = vunpack.c.l.b16 %v740
      %v773 = vunpack.c.l.b16 %v741
      %v774 = vunpack.c.l.b16 %v742
      %v775 = vunpack.c.l.b16 %v743
      %v776 = vunpack.c.l.b16 %v744
      %v777 = vunpack.c.l.b16 %v745
      %v778 = vpack.c.b16 %v763, %v762
      %v779 = vpack.c.b16 %v765, %v764
      %v780 = vpack.c.b16 %v767, %v766
      %v781 = vpack.c.b16 %v769, %v768
      %v782 = vpack.c.b16 %v771, %v770
      %v783 = vpack.c.b16 %v773, %v772
      %v784 = vpack.c.b16 %v775, %v774
      %v785 = vpack.c.b16 %v777, %v776
      %794 = vmatprep.subr.bf16.mxu0 0
      %795 = vmatpush1.bf16.msra.mxu0 %v785
      %796 = vmatprep.subr.bf16.mxu0 0
      %797 = vmatpush1.bf16.msra.mxu0 %v784
      %798 = vmatprep.subr.bf16.mxu0 0
      %799 = vmatpush1.bf16.msra.mxu0 %v783
      %800 = vmatprep.subr.bf16.mxu0 0
      %801 = vmatpush1.bf16.msra.mxu0 %v782
      %802 = vmatprep.subr.bf16.mxu0 0
      %803 = vmatpush1.bf16.msra.mxu0 %v781
      %804 = vmatprep.subr.bf16.mxu0 0
      %805 = vmatpush1.bf16.msra.mxu0 %v780
      %806 = vmatprep.subr.bf16.mxu0 0
      %807 = vmatpush1.bf16.msra.mxu0 %v779
      %808 = vmatprep.subr.bf16.mxu0 0
      %809 = vmatpush1.bf16.msra.mxu0 %v778
      %810 = vmatprep.subr.bf16.mxu0 0
      %811 = vmatpush2.bf16.msra.mxu0 0
      %812 = vmatprep.subr.bf16.mxu0 0
      %813 = vmatpush2.bf16.msra.mxu0 0
      %814 = vmatprep.subr.bf16.mxu0 0
      %815 = vmatpush2.bf16.msra.mxu0 0
      %816 = vmatprep.subr.bf16.mxu0 0
      %817 = vmatpush2.bf16.msra.mxu0 0
      %818 = vmatprep.subr.bf16.mxu0 0
      %819 = vmatpush2.bf16.msra.mxu0 0
      %820 = vmatprep.subr.bf16.mxu0 0
      %821 = vmatpush2.bf16.msra.mxu0 0
      %822 = vmatprep.subr.bf16.mxu0 0
      %823 = vmatpush2.bf16.msra.mxu0 0
      %824 = vmatprep.subr.bf16.mxu0 0
      %825 = vmatpush2.bf16.msra.mxu0 0
      %826 = vmatprep.mubr.bf16.mxu0 0
      %827 = vmatmul.mubr.bf16.gmra.mxu0 %v725
      %v828 = vpop.f32.mrf.mxu0
      %v829 = vadd.f32 0.0, %v828
      %v830 = vpop.f32.mrf.mxu0
      %v831 = vpop.f32.mrf.mxu0
      %v832 = vadd.f32 0.0, %v831
      %v833 = vpop.f32.mrf.mxu0
      %834 = vmatprep.mubr.bf16.mxu0 0
      %835 = vmatmul.mubr.bf16.gmra.mxu0 %v726
      %v836 = vpop.f32.mrf.mxu0
      %v837 = vadd.f32 0.0, %v836
      %v838 = vpop.f32.mrf.mxu0
      %v839 = vpop.f32.mrf.mxu0
      %v840 = vadd.f32 0.0, %v839
      %v841 = vpop.f32.mrf.mxu0
      %842 = vmatprep.mubr.bf16.mxu0 0
      %843 = vmatmul.mubr.bf16.gmra.mxu0 %v727
      %v844 = vpop.f32.mrf.mxu0
      %v845 = vadd.f32 0.0, %v844
      %v846 = vpop.f32.mrf.mxu0
      %v847 = vpop.f32.mrf.mxu0
      %v848 = vadd.f32 0.0, %v847
      %v849 = vpop.f32.mrf.mxu0
      %850 = vmatprep.mubr.bf16.mxu0 0
      %851 = vmatmul.mubr.bf16.gmra.mxu0 %v728
      %v852 = vpop.f32.mrf.mxu0
      %v853 = vadd.f32 0.0, %v852
      %v854 = vpop.f32.mrf.mxu0
      %v855 = vpop.f32.mrf.mxu0
      %v856 = vadd.f32 0.0, %v855
      %v857 = vpop.f32.mrf.mxu0
      %858 = vdwg.mxu0
      %v859 = vadd.f32 %v708, %v829
      %v860 = vadd.f32 %v709, %v832
      %v861 = vadd.f32 %v710, %v837
      %v862 = vadd.f32 %v711, %v840
      %v863 = vadd.f32 %v712, %v845
      %v864 = vadd.f32 %v713, %v848
      %v865 = vadd.f32 %v714, %v853
      %v866 = vadd.f32 %v715, %v856
      %s867 = scalar_lea.vmem %s275, 432
      %v868 = vld [vmem:[%s867] sm:$0xff]
      %v869 = vld [vmem:[%s867 + $0x10] sm:$0xff]
      %v870 = vld [vmem:[%s867 + $0x20] sm:$0xff]
      %v871 = vld [vmem:[%s867 + $0x30] sm:$0xff]
      %v872 = vld [vmem:[%s867 + $0x40] sm:$0xff]
      %v873 = vld [vmem:[%s867 + $0x50] sm:$0xff]
      %v874 = vld [vmem:[%s867 + $0x60] sm:$0xff]
      %v875 = vld [vmem:[%s867 + $0x70] sm:$0xff]
      %v876 = vpack.c.bf16 %v869, %v868
      %v877 = vpack.c.bf16 %v871, %v870
      %v878 = vpack.c.bf16 %v873, %v872
      %v879 = vpack.c.bf16 %v875, %v874
      %s880 = scalar_lea.vmem %s1, 256
      %v881 = vld [vmem:[%s880] sm:$0xf]
      %v882 = vld [vmem:[%s880 + $0x4] sm:$0xf]
      %v883 = vld [vmem:[%s880 + $0x8] sm:$0xf]
      %v884 = vld [vmem:[%s880 + $0xc] sm:$0xf]
      %v885 = vld [vmem:[%s880 + $0x10] sm:$0xf]
      %v886 = vld [vmem:[%s880 + $0x14] sm:$0xf]
      %v887 = vld [vmem:[%s880 + $0x18] sm:$0xf]
      %v888 = vld [vmem:[%s880 + $0x1c] sm:$0xf]
      %v889 = vld [vmem:[%s880 + $0x20] sm:$0xf]
      %v890 = vld [vmem:[%s880 + $0x24] sm:$0xf]
      %v891 = vld [vmem:[%s880 + $0x28] sm:$0xf]
      %v892 = vld [vmem:[%s880 + $0x2c] sm:$0xf]
      %v893 = vld [vmem:[%s880 + $0x30] sm:$0xf]
      %v894 = vld [vmem:[%s880 + $0x34] sm:$0xf]
      %v895 = vld [vmem:[%s880 + $0x38] sm:$0xf]
      %v896 = vld [vmem:[%s880 + $0x3c] sm:$0xf]
      %v913 = vunpack.c.l.b16 %v881
      %v914 = vunpack.c.l.b16 %v882
      %v915 = vunpack.c.l.b16 %v883
      %v916 = vunpack.c.l.b16 %v884
      %v917 = vunpack.c.l.b16 %v885
      %v918 = vunpack.c.l.b16 %v886
      %v919 = vunpack.c.l.b16 %v887
      %v920 = vunpack.c.l.b16 %v888
      %v921 = vunpack.c.l.b16 %v889
      %v922 = vunpack.c.l.b16 %v890
      %v923 = vunpack.c.l.b16 %v891
      %v924 = vunpack.c.l.b16 %v892
      %v925 = vunpack.c.l.b16 %v893
      %v926 = vunpack.c.l.b16 %v894
      %v927 = vunpack.c.l.b16 %v895
      %v928 = vunpack.c.l.b16 %v896
      %v929 = vpack.c.b16 %v914, %v913
      %v930 = vpack.c.b16 %v916, %v915
      %v931 = vpack.c.b16 %v918, %v917
      %v932 = vpack.c.b16 %v920, %v919
      %v933 = vpack.c.b16 %v922, %v921
      %v934 = vpack.c.b16 %v924, %v923
      %v935 = vpack.c.b16 %v926, %v925
      %v936 = vpack.c.b16 %v928, %v927
      %945 = vmatprep.subr.bf16.mxu0 0
      %946 = vmatpush1.bf16.msra.mxu0 %v936
      %947 = vmatprep.subr.bf16.mxu0 0
      %948 = vmatpush1.bf16.msra.mxu0 %v935
      %949 = vmatprep.subr.bf16.mxu0 0
      %950 = vmatpush1.bf16.msra.mxu0 %v934
      %951 = vmatprep.subr.bf16.mxu0 0
      %952 = vmatpush1.bf16.msra.mxu0 %v933
      %953 = vmatprep.subr.bf16.mxu0 0
      %954 = vmatpush1.bf16.msra.mxu0 %v932
      %955 = vmatprep.subr.bf16.mxu0 0
      %956 = vmatpush1.bf16.msra.mxu0 %v931
      %957 = vmatprep.subr.bf16.mxu0 0
      %958 = vmatpush1.bf16.msra.mxu0 %v930
      %959 = vmatprep.subr.bf16.mxu0 0
      %960 = vmatpush1.bf16.msra.mxu0 %v929
      %961 = vmatprep.subr.bf16.mxu0 0
      %962 = vmatpush2.bf16.msra.mxu0 0
      %963 = vmatprep.subr.bf16.mxu0 0
      %964 = vmatpush2.bf16.msra.mxu0 0
      %965 = vmatprep.subr.bf16.mxu0 0
      %966 = vmatpush2.bf16.msra.mxu0 0
      %967 = vmatprep.subr.bf16.mxu0 0
      %968 = vmatpush2.bf16.msra.mxu0 0
      %969 = vmatprep.subr.bf16.mxu0 0
      %970 = vmatpush2.bf16.msra.mxu0 0
      %971 = vmatprep.subr.bf16.mxu0 0
      %972 = vmatpush2.bf16.msra.mxu0 0
      %973 = vmatprep.subr.bf16.mxu0 0
      %974 = vmatpush2.bf16.msra.mxu0 0
      %975 = vmatprep.subr.bf16.mxu0 0
      %976 = vmatpush2.bf16.msra.mxu0 0
      %977 = vmatprep.mubr.bf16.mxu0 0
      %978 = vmatmul.mubr.bf16.gmra.mxu0 %v876
      %v979 = vpop.f32.mrf.mxu0
      %v980 = vadd.f32 0.0, %v979
      %v981 = vpop.f32.mrf.mxu0
      %v982 = vpop.f32.mrf.mxu0
      %v983 = vadd.f32 0.0, %v982
      %v984 = vpop.f32.mrf.mxu0
      %985 = vmatprep.mubr.bf16.mxu0 0
      %986 = vmatmul.mubr.bf16.gmra.mxu0 %v877
      %v987 = vpop.f32.mrf.mxu0
      %v988 = vadd.f32 0.0, %v987
      %v989 = vpop.f32.mrf.mxu0
      %v990 = vpop.f32.mrf.mxu0
      %v991 = vadd.f32 0.0, %v990
      %v992 = vpop.f32.mrf.mxu0
      %993 = vmatprep.mubr.bf16.mxu0 0
      %994 = vmatmul.mubr.bf16.gmra.mxu0 %v878
      %v995 = vpop.f32.mrf.mxu0
      %v996 = vadd.f32 0.0, %v995
      %v997 = vpop.f32.mrf.mxu0
      %v998 = vpop.f32.mrf.mxu0
      %v999 = vadd.f32 0.0, %v998
      %v1000 = vpop.f32.mrf.mxu0
      %1001 = vmatprep.mubr.bf16.mxu0 0
      %1002 = vmatmul.mubr.bf16.gmra.mxu0 %v879
      %v1003 = vpop.f32.mrf.mxu0
      %v1004 = vadd.f32 0.0, %v1003
      %v1005 = vpop.f32.mrf.mxu0
      %v1006 = vpop.f32.mrf.mxu0
      %v1007 = vadd.f32 0.0, %v1006
      %v1008 = vpop.f32.mrf.mxu0
      %1009 = vdwg.mxu0
      %v1010 = vadd.f32 %v859, %v980
      %v1011 = vadd.f32 %v860, %v983
      %v1012 = vadd.f32 %v861, %v988
      %v1013 = vadd.f32 %v862, %v991
      %v1014 = vadd.f32 %v863, %v996
      %v1015 = vadd.f32 %v864, %v999
      %v1016 = vadd.f32 %v865, %v1004
      %v1017 = vadd.f32 %v866, %v1007
      %v1018 = vld [vmem:[%s716 + $0x1] sm:$0xff]
      %v1019 = vld [vmem:[%s716 + $0x11] sm:$0xff]
      %v1020 = vld [vmem:[%s716 + $0x21] sm:$0xff]
      %v1021 = vld [vmem:[%s716 + $0x31] sm:$0xff]
      %v1022 = vld [vmem:[%s716 + $0x41] sm:$0xff]
      %v1023 = vld [vmem:[%s716 + $0x51] sm:$0xff]
      %v1024 = vld [vmem:[%s716 + $0x61] sm:$0xff]
      %v1025 = vld [vmem:[%s716 + $0x71] sm:$0xff]
      %v1026 = vpack.c.bf16 %v1019, %v1018
      %v1027 = vpack.c.bf16 %v1021, %v1020
      %v1028 = vpack.c.bf16 %v1023, %v1022
      %v1029 = vpack.c.bf16 %v1025, %v1024
      %s1030 = scalar_lea.vmem %s1, 320
      %v1031 = vld [vmem:[%s1030] sm:$0xf]
      %v1032 = vld [vmem:[%s1030 + $0x4] sm:$0xf]
      %v1033 = vld [vmem:[%s1030 + $0x8] sm:$0xf]
      %v1034 = vld [vmem:[%s1030 + $0xc] sm:$0xf]
      %v1035 = vld [vmem:[%s1030 + $0x10] sm:$0xf]
      %v1036 = vld [vmem:[%s1030 + $0x14] sm:$0xf]
      %v1037 = vld [vmem:[%s1030 + $0x18] sm:$0xf]
      %v1038 = vld [vmem:[%s1030 + $0x1c] sm:$0xf]
      %v1039 = vld [vmem:[%s1030 + $0x20] sm:$0xf]
      %v1040 = vld [vmem:[%s1030 + $0x24] sm:$0xf]
      %v1041 = vld [vmem:[%s1030 + $0x28] sm:$0xf]
      %v1042 = vld [vmem:[%s1030 + $0x2c] sm:$0xf]
      %v1043 = vld [vmem:[%s1030 + $0x30] sm:$0xf]
      %v1044 = vld [vmem:[%s1030 + $0x34] sm:$0xf]
      %v1045 = vld [vmem:[%s1030 + $0x38] sm:$0xf]
      %v1046 = vld [vmem:[%s1030 + $0x3c] sm:$0xf]
      %v1063 = vunpack.c.l.b16 %v1031
      %v1064 = vunpack.c.l.b16 %v1032
      %v1065 = vunpack.c.l.b16 %v1033
      %v1066 = vunpack.c.l.b16 %v1034
      %v1067 = vunpack.c.l.b16 %v1035
      %v1068 = vunpack.c.l.b16 %v1036
      %v1069 = vunpack.c.l.b16 %v1037
      %v1070 = vunpack.c.l.b16 %v1038
      %v1071 = vunpack.c.l.b16 %v1039
      %v1072 = vunpack.c.l.b16 %v1040
      %v1073 = vunpack.c.l.b16 %v1041
      %v1074 = vunpack.c.l.b16 %v1042
      %v1075 = vunpack.c.l.b16 %v1043
      %v1076 = vunpack.c.l.b16 %v1044
      %v1077 = vunpack.c.l.b16 %v1045
      %v1078 = vunpack.c.l.b16 %v1046
      %v1079 = vpack.c.b16 %v1064, %v1063
      %v1080 = vpack.c.b16 %v1066, %v1065
      %v1081 = vpack.c.b16 %v1068, %v1067
      %v1082 = vpack.c.b16 %v1070, %v1069
      %v1083 = vpack.c.b16 %v1072, %v1071
      %v1084 = vpack.c.b16 %v1074, %v1073
      %v1085 = vpack.c.b16 %v1076, %v1075
      %v1086 = vpack.c.b16 %v1078, %v1077
      %1095 = vmatprep.subr.bf16.mxu0 0
      %1096 = vmatpush1.bf16.msra.mxu0 %v1086
      %1097 = vmatprep.subr.bf16.mxu0 0
      %1098 = vmatpush1.bf16.msra.mxu0 %v1085
      %1099 = vmatprep.subr.bf16.mxu0 0
      %1100 = vmatpush1.bf16.msra.mxu0 %v1084
      %1101 = vmatprep.subr.bf16.mxu0 0
      %1102 = vmatpush1.bf16.msra.mxu0 %v1083
      %1103 = vmatprep.subr.bf16.mxu0 0
      %1104 = vmatpush1.bf16.msra.mxu0 %v1082
      %1105 = vmatprep.subr.bf16.mxu0 0
      %1106 = vmatpush1.bf16.msra.mxu0 %v1081
      %1107 = vmatprep.subr.bf16.mxu0 0
      %1108 = vmatpush1.bf16.msra.mxu0 %v1080
      %1109 = vmatprep.subr.bf16.mxu0 0
      %1110 = vmatpush1.bf16.msra.mxu0 %v1079
      %1111 = vmatprep.subr.bf16.mxu0 0
      %1112 = vmatpush2.bf16.msra.mxu0 0
      %1113 = vmatprep.subr.bf16.mxu0 0
      %1114 = vmatpush2.bf16.msra.mxu0 0
      %1115 = vmatprep.subr.bf16.mxu0 0
      %1116 = vmatpush2.bf16.msra.mxu0 0
      %1117 = vmatprep.subr.bf16.mxu0 0
      %1118 = vmatpush2.bf16.msra.mxu0 0
      %1119 = vmatprep.subr.bf16.mxu0 0
      %1120 = vmatpush2.bf16.msra.mxu0 0
      %1121 = vmatprep.subr.bf16.mxu0 0
      %1122 = vmatpush2.bf16.msra.mxu0 0
      %1123 = vmatprep.subr.bf16.mxu0 0
      %1124 = vmatpush2.bf16.msra.mxu0 0
      %1125 = vmatprep.subr.bf16.mxu0 0
      %1126 = vmatpush2.bf16.msra.mxu0 0
      %1127 = vmatprep.mubr.bf16.mxu0 0
      %1128 = vmatmul.mubr.bf16.gmra.mxu0 %v1026
      %v1129 = vpop.f32.mrf.mxu0
      %v1130 = vadd.f32 0.0, %v1129
      %v1131 = vpop.f32.mrf.mxu0
      %v1132 = vpop.f32.mrf.mxu0
      %v1133 = vadd.f32 0.0, %v1132
      %v1134 = vpop.f32.mrf.mxu0
      %1135 = vmatprep.mubr.bf16.mxu0 0
      %1136 = vmatmul.mubr.bf16.gmra.mxu0 %v1027
      %v1137 = vpop.f32.mrf.mxu0
      %v1138 = vadd.f32 0.0, %v1137
      %v1139 = vpop.f32.mrf.mxu0
      %v1140 = vpop.f32.mrf.mxu0
      %v1141 = vadd.f32 0.0, %v1140
      %v1142 = vpop.f32.mrf.mxu0
      %1143 = vmatprep.mubr.bf16.mxu0 0
      %1144 = vmatmul.mubr.bf16.gmra.mxu0 %v1028
      %v1145 = vpop.f32.mrf.mxu0
      %v1146 = vadd.f32 0.0, %v1145
      %v1147 = vpop.f32.mrf.mxu0
      %v1148 = vpop.f32.mrf.mxu0
      %v1149 = vadd.f32 0.0, %v1148
      %v1150 = vpop.f32.mrf.mxu0
      %1151 = vmatprep.mubr.bf16.mxu0 0
      %1152 = vmatmul.mubr.bf16.gmra.mxu0 %v1029
      %v1153 = vpop.f32.mrf.mxu0
      %v1154 = vadd.f32 0.0, %v1153
      %v1155 = vpop.f32.mrf.mxu0
      %v1156 = vpop.f32.mrf.mxu0
      %v1157 = vadd.f32 0.0, %v1156
      %v1158 = vpop.f32.mrf.mxu0
      %1159 = vdwg.mxu0
      %v1160 = vadd.f32 %v1010, %v1130
      %v1161 = vadd.f32 %v1011, %v1133
      %v1162 = vadd.f32 %v1012, %v1138
      %v1163 = vadd.f32 %v1013, %v1141
      %v1164 = vadd.f32 %v1014, %v1146
      %v1165 = vadd.f32 %v1015, %v1149
      %v1166 = vadd.f32 %v1016, %v1154
      %v1167 = vadd.f32 %v1017, %v1157
      %s1168 = scalar_lea.vmem %s275, 16
      %v1169 = vld [vmem:[%s1168] sm:$0xff]
      %v1170 = vld [vmem:[%s1168 + $0x10] sm:$0xff]
      %v1171 = vld [vmem:[%s1168 + $0x20] sm:$0xff]
      %v1172 = vld [vmem:[%s1168 + $0x30] sm:$0xff]
      %v1173 = vld [vmem:[%s1168 + $0x40] sm:$0xff]
      %v1174 = vld [vmem:[%s1168 + $0x50] sm:$0xff]
      %v1175 = vld [vmem:[%s1168 + $0x60] sm:$0xff]
      %v1176 = vld [vmem:[%s1168 + $0x70] sm:$0xff]
      %v1177 = vpack.c.bf16 %v1170, %v1169
      %v1178 = vpack.c.bf16 %v1172, %v1171
      %v1179 = vpack.c.bf16 %v1174, %v1173
      %v1180 = vpack.c.bf16 %v1176, %v1175
      %s1181 = scalar_lea.vmem %s1, 384
      %v1182 = vld [vmem:[%s1181] sm:$0xf]
      %v1183 = vld [vmem:[%s1181 + $0x4] sm:$0xf]
      %v1184 = vld [vmem:[%s1181 + $0x8] sm:$0xf]
      %v1185 = vld [vmem:[%s1181 + $0xc] sm:$0xf]
      %v1186 = vld [vmem:[%s1181 + $0x10] sm:$0xf]
      %v1187 = vld [vmem:[%s1181 + $0x14] sm:$0xf]
      %v1188 = vld [vmem:[%s1181 + $0x18] sm:$0xf]
      %v1189 = vld [vmem:[%s1181 + $0x1c] sm:$0xf]
      %v1190 = vld [vmem:[%s1181 + $0x20] sm:$0xf]
      %v1191 = vld [vmem:[%s1181 + $0x24] sm:$0xf]
      %v1192 = vld [vmem:[%s1181 + $0x28] sm:$0xf]
      %v1193 = vld [vmem:[%s1181 + $0x2c] sm:$0xf]
      %v1194 = vld [vmem:[%s1181 + $0x30] sm:$0xf]
      %v1195 = vld [vmem:[%s1181 + $0x34] sm:$0xf]
      %v1196 = vld [vmem:[%s1181 + $0x38] sm:$0xf]
      %v1197 = vld [vmem:[%s1181 + $0x3c] sm:$0xf]
      %v1214 = vunpack.c.l.b16 %v1182
      %v1215 = vunpack.c.l.b16 %v1183
      %v1216 = vunpack.c.l.b16 %v1184
      %v1217 = vunpack.c.l.b16 %v1185
      %v1218 = vunpack.c.l.b16 %v1186
      %v1219 = vunpack.c.l.b16 %v1187
      %v1220 = vunpack.c.l.b16 %v1188
      %v1221 = vunpack.c.l.b16 %v1189
      %v1222 = vunpack.c.l.b16 %v1190
      %v1223 = vunpack.c.l.b16 %v1191
      %v1224 = vunpack.c.l.b16 %v1192
      %v1225 = vunpack.c.l.b16 %v1193
      %v1226 = vunpack.c.l.b16 %v1194
      %v1227 = vunpack.c.l.b16 %v1195
      %v1228 = vunpack.c.l.b16 %v1196
      %v1229 = vunpack.c.l.b16 %v1197
      %v1230 = vpack.c.b16 %v1215, %v1214
      %v1231 = vpack.c.b16 %v1217, %v1216
      %v1232 = vpack.c.b16 %v1219, %v1218
      %v1233 = vpack.c.b16 %v1221, %v1220
      %v1234 = vpack.c.b16 %v1223, %v1222
      %v1235 = vpack.c.b16 %v1225, %v1224
      %v1236 = vpack.c.b16 %v1227, %v1226
      %v1237 = vpack.c.b16 %v1229, %v1228
      %1246 = vmatprep.subr.bf16.mxu0 0
      %1247 = vmatpush1.bf16.msra.mxu0 %v1237
      %1248 = vmatprep.subr.bf16.mxu0 0
      %1249 = vmatpush1.bf16.msra.mxu0 %v1236
      %1250 = vmatprep.subr.bf16.mxu0 0
      %1251 = vmatpush1.bf16.msra.mxu0 %v1235
      %1252 = vmatprep.subr.bf16.mxu0 0
      %1253 = vmatpush1.bf16.msra.mxu0 %v1234
      %1254 = vmatprep.subr.bf16.mxu0 0
      %1255 = vmatpush1.bf16.msra.mxu0 %v1233
      %1256 = vmatprep.subr.bf16.mxu0 0
      %1257 = vmatpush1.bf16.msra.mxu0 %v1232
      %1258 = vmatprep.subr.bf16.mxu0 0
      %1259 = vmatpush1.bf16.msra.mxu0 %v1231
      %1260 = vmatprep.subr.bf16.mxu0 0
      %1261 = vmatpush1.bf16.msra.mxu0 %v1230
      %1262 = vmatprep.subr.bf16.mxu0 0
      %1263 = vmatpush2.bf16.msra.mxu0 0
      %1264 = vmatprep.subr.bf16.mxu0 0
      %1265 = vmatpush2.bf16.msra.mxu0 0
      %1266 = vmatprep.subr.bf16.mxu0 0
      %1267 = vmatpush2.bf16.msra.mxu0 0
      %1268 = vmatprep.subr.bf16.mxu0 0
      %1269 = vmatpush2.bf16.msra.mxu0 0
      %1270 = vmatprep.subr.bf16.mxu0 0
      %1271 = vmatpush2.bf16.msra.mxu0 0
      %1272 = vmatprep.subr.bf16.mxu0 0
      %1273 = vmatpush2.bf16.msra.mxu0 0
      %1274 = vmatprep.subr.bf16.mxu0 0
      %1275 = vmatpush2.bf16.msra.mxu0 0
      %1276 = vmatprep.subr.bf16.mxu0 0
      %1277 = vmatpush2.bf16.msra.mxu0 0
      %1278 = vmatprep.mubr.bf16.mxu0 0
      %1279 = vmatmul.mubr.bf16.gmra.mxu0 %v1177
      %v1280 = vpop.f32.mrf.mxu0
      %v1281 = vadd.f32 0.0, %v1280
      %v1282 = vpop.f32.mrf.mxu0
      %v1283 = vpop.f32.mrf.mxu0
      %v1284 = vadd.f32 0.0, %v1283
      %v1285 = vpop.f32.mrf.mxu0
      %1286 = vmatprep.mubr.bf16.mxu0 0
      %1287 = vmatmul.mubr.bf16.gmra.mxu0 %v1178
      %v1288 = vpop.f32.mrf.mxu0
      %v1289 = vadd.f32 0.0, %v1288
      %v1290 = vpop.f32.mrf.mxu0
      %v1291 = vpop.f32.mrf.mxu0
      %v1292 = vadd.f32 0.0, %v1291
      %v1293 = vpop.f32.mrf.mxu0
      %1294 = vmatprep.mubr.bf16.mxu0 0
      %1295 = vmatmul.mubr.bf16.gmra.mxu0 %v1179
      %v1296 = vpop.f32.mrf.mxu0
      %v1297 = vadd.f32 0.0, %v1296
      %v1298 = vpop.f32.mrf.mxu0
      %v1299 = vpop.f32.mrf.mxu0
      %v1300 = vadd.f32 0.0, %v1299
      %v1301 = vpop.f32.mrf.mxu0
      %1302 = vmatprep.mubr.bf16.mxu0 0
      %1303 = vmatmul.mubr.bf16.gmra.mxu0 %v1180
      %v1304 = vpop.f32.mrf.mxu0
      %v1305 = vadd.f32 0.0, %v1304
      %v1306 = vpop.f32.mrf.mxu0
      %v1307 = vpop.f32.mrf.mxu0
      %v1308 = vadd.f32 0.0, %v1307
      %v1309 = vpop.f32.mrf.mxu0
      %1310 = vdwg.mxu0
      %v1311 = vadd.f32 %v1160, %v1281
      %v1312 = vadd.f32 %v1161, %v1284
      %v1313 = vadd.f32 %v1162, %v1289
      %v1314 = vadd.f32 %v1163, %v1292
      %v1315 = vadd.f32 %v1164, %v1297
      %v1316 = vadd.f32 %v1165, %v1300
      %v1317 = vadd.f32 %v1166, %v1305
      %v1318 = vadd.f32 %v1167, %v1308
      %s1319 = scalar_lea.vmem %s275, 160
      %v1320 = vld [vmem:[%s1319] sm:$0xff]
      %v1321 = vld [vmem:[%s1319 + $0x10] sm:$0xff]
      %v1322 = vld [vmem:[%s1319 + $0x20] sm:$0xff]
      %v1323 = vld [vmem:[%s1319 + $0x30] sm:$0xff]
      %v1324 = vld [vmem:[%s1319 + $0x40] sm:$0xff]
      %v1325 = vld [vmem:[%s1319 + $0x50] sm:$0xff]
      %v1326 = vld [vmem:[%s1319 + $0x60] sm:$0xff]
      %v1327 = vld [vmem:[%s1319 + $0x70] sm:$0xff]
      %v1328 = vpack.c.bf16 %v1321, %v1320
      %v1329 = vpack.c.bf16 %v1323, %v1322
      %v1330 = vpack.c.bf16 %v1325, %v1324
      %v1331 = vpack.c.bf16 %v1327, %v1326
      %s1332 = scalar_lea.vmem %s1, 448
      %v1333 = vld [vmem:[%s1332] sm:$0xf]
      %v1334 = vld [vmem:[%s1332 + $0x4] sm:$0xf]
      %v1335 = vld [vmem:[%s1332 + $0x8] sm:$0xf]
      %v1336 = vld [vmem:[%s1332 + $0xc] sm:$0xf]
      %v1337 = vld [vmem:[%s1332 + $0x10] sm:$0xf]
      %v1338 = vld [vmem:[%s1332 + $0x14] sm:$0xf]
      %v1339 = vld [vmem:[%s1332 + $0x18] sm:$0xf]
      %v1340 = vld [vmem:[%s1332 + $0x1c] sm:$0xf]
      %v1341 = vld [vmem:[%s1332 + $0x20] sm:$0xf]
      %v1342 = vld [vmem:[%s1332 + $0x24] sm:$0xf]
      %v1343 = vld [vmem:[%s1332 + $0x28] sm:$0xf]
      %v1344 = vld [vmem:[%s1332 + $0x2c] sm:$0xf]
      %v1345 = vld [vmem:[%s1332 + $0x30] sm:$0xf]
      %v1346 = vld [vmem:[%s1332 + $0x34] sm:$0xf]
      %v1347 = vld [vmem:[%s1332 + $0x38] sm:$0xf]
      %v1348 = vld [vmem:[%s1332 + $0x3c] sm:$0xf]
      %v1365 = vunpack.c.l.b16 %v1333
      %v1366 = vunpack.c.l.b16 %v1334
      %v1367 = vunpack.c.l.b16 %v1335
      %v1368 = vunpack.c.l.b16 %v1336
      %v1369 = vunpack.c.l.b16 %v1337
      %v1370 = vunpack.c.l.b16 %v1338
      %v1371 = vunpack.c.l.b16 %v1339
      %v1372 = vunpack.c.l.b16 %v1340
      %v1373 = vunpack.c.l.b16 %v1341
      %v1374 = vunpack.c.l.b16 %v1342
      %v1375 = vunpack.c.l.b16 %v1343
      %v1376 = vunpack.c.l.b16 %v1344
      %v1377 = vunpack.c.l.b16 %v1345
      %v1378 = vunpack.c.l.b16 %v1346
      %v1379 = vunpack.c.l.b16 %v1347
      %v1380 = vunpack.c.l.b16 %v1348
      %v1381 = vpack.c.b16 %v1366, %v1365
      %v1382 = vpack.c.b16 %v1368, %v1367
      %v1383 = vpack.c.b16 %v1370, %v1369
      %v1384 = vpack.c.b16 %v1372, %v1371
      %v1385 = vpack.c.b16 %v1374, %v1373
      %v1386 = vpack.c.b16 %v1376, %v1375
      %v1387 = vpack.c.b16 %v1378, %v1377
      %v1388 = vpack.c.b16 %v1380, %v1379
      %1397 = vmatprep.subr.bf16.mxu0 0
      %1398 = vmatpush1.bf16.msra.mxu0 %v1388
      %1399 = vmatprep.subr.bf16.mxu0 0
      %1400 = vmatpush1.bf16.msra.mxu0 %v1387
      %1401 = vmatprep.subr.bf16.mxu0 0
      %1402 = vmatpush1.bf16.msra.mxu0 %v1386
      %1403 = vmatprep.subr.bf16.mxu0 0
      %1404 = vmatpush1.bf16.msra.mxu0 %v1385
      %1405 = vmatprep.subr.bf16.mxu0 0
      %1406 = vmatpush1.bf16.msra.mxu0 %v1384
      %1407 = vmatprep.subr.bf16.mxu0 0
      %1408 = vmatpush1.bf16.msra.mxu0 %v1383
      %1409 = vmatprep.subr.bf16.mxu0 0
      %1410 = vmatpush1.bf16.msra.mxu0 %v1382
      %1411 = vmatprep.subr.bf16.mxu0 0
      %1412 = vmatpush1.bf16.msra.mxu0 %v1381
      %1413 = vmatprep.subr.bf16.mxu0 0
      %1414 = vmatpush2.bf16.msra.mxu0 0
      %1415 = vmatprep.subr.bf16.mxu0 0
      %1416 = vmatpush2.bf16.msra.mxu0 0
      %1417 = vmatprep.subr.bf16.mxu0 0
      %1418 = vmatpush2.bf16.msra.mxu0 0
      %1419 = vmatprep.subr.bf16.mxu0 0
      %1420 = vmatpush2.bf16.msra.mxu0 0
      %1421 = vmatprep.subr.bf16.mxu0 0
      %1422 = vmatpush2.bf16.msra.mxu0 0
      %1423 = vmatprep.subr.bf16.mxu0 0
      %1424 = vmatpush2.bf16.msra.mxu0 0
      %1425 = vmatprep.subr.bf16.mxu0 0
      %1426 = vmatpush2.bf16.msra.mxu0 0
      %1427 = vmatprep.subr.bf16.mxu0 0
      %1428 = vmatpush2.bf16.msra.mxu0 0
      %1429 = vmatprep.mubr.bf16.mxu0 0
      %1430 = vmatmul.mubr.bf16.gmra.mxu0 %v1328
      %v1431 = vpop.f32.mrf.mxu0
      %v1432 = vadd.f32 0.0, %v1431
      %v1433 = vpop.f32.mrf.mxu0
      %v1434 = vpop.f32.mrf.mxu0
      %v1435 = vadd.f32 0.0, %v1434
      %v1436 = vpop.f32.mrf.mxu0
      %1437 = vmatprep.mubr.bf16.mxu0 0
      %1438 = vmatmul.mubr.bf16.gmra.mxu0 %v1329
      %v1439 = vpop.f32.mrf.mxu0
      %v1440 = vadd.f32 0.0, %v1439
      %v1441 = vpop.f32.mrf.mxu0
      %v1442 = vpop.f32.mrf.mxu0
      %v1443 = vadd.f32 0.0, %v1442
      %v1444 = vpop.f32.mrf.mxu0
      %1445 = vmatprep.mubr.bf16.mxu0 0
      %1446 = vmatmul.mubr.bf16.gmra.mxu0 %v1330
      %v1447 = vpop.f32.mrf.mxu0
      %v1448 = vadd.f32 0.0, %v1447
      %v1449 = vpop.f32.mrf.mxu0
      %v1450 = vpop.f32.mrf.mxu0
      %v1451 = vadd.f32 0.0, %v1450
      %v1452 = vpop.f32.mrf.mxu0
      %1453 = vmatprep.mubr.bf16.mxu0 0
      %1454 = vmatmul.mubr.bf16.gmra.mxu0 %v1331
      %v1455 = vpop.f32.mrf.mxu0
      %v1456 = vadd.f32 0.0, %v1455
      %v1457 = vpop.f32.mrf.mxu0
      %v1458 = vpop.f32.mrf.mxu0
      %v1459 = vadd.f32 0.0, %v1458
      %v1460 = vpop.f32.mrf.mxu0
      %1461 = vdwg.mxu0
      %v1462 = vadd.f32 %v1311, %v1432
      %v1463 = vadd.f32 %v1312, %v1435
      %v1464 = vadd.f32 %v1313, %v1440
      %v1465 = vadd.f32 %v1314, %v1443
      %v1466 = vadd.f32 %v1315, %v1448
      %v1467 = vadd.f32 %v1316, %v1451
      %v1468 = vadd.f32 %v1317, %v1456
      %v1469 = vadd.f32 %v1318, %v1459
      %v1470 = vld [vmem:[%s1168 + $0x1] sm:$0xff]
      %v1471 = vld [vmem:[%s1168 + $0x11] sm:$0xff]
      %v1472 = vld [vmem:[%s1168 + $0x21] sm:$0xff]
      %v1473 = vld [vmem:[%s1168 + $0x31] sm:$0xff]
      %v1474 = vld [vmem:[%s1168 + $0x41] sm:$0xff]
      %v1475 = vld [vmem:[%s1168 + $0x51] sm:$0xff]
      %v1476 = vld [vmem:[%s1168 + $0x61] sm:$0xff]
      %v1477 = vld [vmem:[%s1168 + $0x71] sm:$0xff]
      %v1478 = vpack.c.bf16 %v1471, %v1470
      %v1479 = vpack.c.bf16 %v1473, %v1472
      %v1480 = vpack.c.bf16 %v1475, %v1474
      %v1481 = vpack.c.bf16 %v1477, %v1476
      %s1482 = scalar_lea.vmem %s1, 512
      %v1483 = vld [vmem:[%s1482] sm:$0xf]
      %v1484 = vld [vmem:[%s1482 + $0x4] sm:$0xf]
      %v1485 = vld [vmem:[%s1482 + $0x8] sm:$0xf]
      %v1486 = vld [vmem:[%s1482 + $0xc] sm:$0xf]
      %v1487 = vld [vmem:[%s1482 + $0x10] sm:$0xf]
      %v1488 = vld [vmem:[%s1482 + $0x14] sm:$0xf]
      %v1489 = vld [vmem:[%s1482 + $0x18] sm:$0xf]
      %v1490 = vld [vmem:[%s1482 + $0x1c] sm:$0xf]
      %v1491 = vld [vmem:[%s1482 + $0x20] sm:$0xf]
      %v1492 = vld [vmem:[%s1482 + $0x24] sm:$0xf]
      %v1493 = vld [vmem:[%s1482 + $0x28] sm:$0xf]
      %v1494 = vld [vmem:[%s1482 + $0x2c] sm:$0xf]
      %v1495 = vld [vmem:[%s1482 + $0x30] sm:$0xf]
      %v1496 = vld [vmem:[%s1482 + $0x34] sm:$0xf]
      %v1497 = vld [vmem:[%s1482 + $0x38] sm:$0xf]
      %v1498 = vld [vmem:[%s1482 + $0x3c] sm:$0xf]
      %v1515 = vunpack.c.l.b16 %v1483
      %v1516 = vunpack.c.l.b16 %v1484
      %v1517 = vunpack.c.l.b16 %v1485
      %v1518 = vunpack.c.l.b16 %v1486
      %v1519 = vunpack.c.l.b16 %v1487
      %v1520 = vunpack.c.l.b16 %v1488
      %v1521 = vunpack.c.l.b16 %v1489
      %v1522 = vunpack.c.l.b16 %v1490
      %v1523 = vunpack.c.l.b16 %v1491
      %v1524 = vunpack.c.l.b16 %v1492
      %v1525 = vunpack.c.l.b16 %v1493
      %v1526 = vunpack.c.l.b16 %v1494
      %v1527 = vunpack.c.l.b16 %v1495
      %v1528 = vunpack.c.l.b16 %v1496
      %v1529 = vunpack.c.l.b16 %v1497
      %v1530 = vunpack.c.l.b16 %v1498
      %v1531 = vpack.c.b16 %v1516, %v1515
      %v1532 = vpack.c.b16 %v1518, %v1517
      %v1533 = vpack.c.b16 %v1520, %v1519
      %v1534 = vpack.c.b16 %v1522, %v1521
      %v1535 = vpack.c.b16 %v1524, %v1523
      %v1536 = vpack.c.b16 %v1526, %v1525
      %v1537 = vpack.c.b16 %v1528, %v1527
      %v1538 = vpack.c.b16 %v1530, %v1529
      %1547 = vmatprep.subr.bf16.mxu0 0
      %1548 = vmatpush1.bf16.msra.mxu0 %v1538
      %1549 = vmatprep.subr.bf16.mxu0 0
      %1550 = vmatpush1.bf16.msra.mxu0 %v1537
      %1551 = vmatprep.subr.bf16.mxu0 0
      %1552 = vmatpush1.bf16.msra.mxu0 %v1536
      %1553 = vmatprep.subr.bf16.mxu0 0
      %1554 = vmatpush1.bf16.msra.mxu0 %v1535
      %1555 = vmatprep.subr.bf16.mxu0 0
      %1556 = vmatpush1.bf16.msra.mxu0 %v1534
      %1557 = vmatprep.subr.bf16.mxu0 0
      %1558 = vmatpush1.bf16.msra.mxu0 %v1533
      %1559 = vmatprep.subr.bf16.mxu0 0
      %1560 = vmatpush1.bf16.msra.mxu0 %v1532
      %1561 = vmatprep.subr.bf16.mxu0 0
      %1562 = vmatpush1.bf16.msra.mxu0 %v1531
      %1563 = vmatprep.subr.bf16.mxu0 0
      %1564 = vmatpush2.bf16.msra.mxu0 0
      %1565 = vmatprep.subr.bf16.mxu0 0
      %1566 = vmatpush2.bf16.msra.mxu0 0
      %1567 = vmatprep.subr.bf16.mxu0 0
      %1568 = vmatpush2.bf16.msra.mxu0 0
      %1569 = vmatprep.subr.bf16.mxu0 0
      %1570 = vmatpush2.bf16.msra.mxu0 0
      %1571 = vmatprep.subr.bf16.mxu0 0
      %1572 = vmatpush2.bf16.msra.mxu0 0
      %1573 = vmatprep.subr.bf16.mxu0 0
      %1574 = vmatpush2.bf16.msra.mxu0 0
      %1575 = vmatprep.subr.bf16.mxu0 0
      %1576 = vmatpush2.bf16.msra.mxu0 0
      %1577 = vmatprep.subr.bf16.mxu0 0
      %1578 = vmatpush2.bf16.msra.mxu0 0
      %1579 = vmatprep.mubr.bf16.mxu0 0
      %1580 = vmatmul.mubr.bf16.gmra.mxu0 %v1478
      %v1581 = vpop.f32.mrf.mxu0
      %v1582 = vadd.f32 0.0, %v1581
      %v1583 = vpop.f32.mrf.mxu0
      %v1584 = vpop.f32.mrf.mxu0
      %v1585 = vadd.f32 0.0, %v1584
      %v1586 = vpop.f32.mrf.mxu0
      %1587 = vmatprep.mubr.bf16.mxu0 0
      %1588 = vmatmul.mubr.bf16.gmra.mxu0 %v1479
      %v1589 = vpop.f32.mrf.mxu0
      %v1590 = vadd.f32 0.0, %v1589
      %v1591 = vpop.f32.mrf.mxu0
      %v1592 = vpop.f32.mrf.mxu0
      %v1593 = vadd.f32 0.0, %v1592
      %v1594 = vpop.f32.mrf.mxu0
      %1595 = vmatprep.mubr.bf16.mxu0 0
      %1596 = vmatmul.mubr.bf16.gmra.mxu0 %v1480
      %v1597 = vpop.f32.mrf.mxu0
      %v1598 = vadd.f32 0.0, %v1597
      %v1599 = vpop.f32.mrf.mxu0
      %v1600 = vpop.f32.mrf.mxu0
      %v1601 = vadd.f32 0.0, %v1600
      %v1602 = vpop.f32.mrf.mxu0
      %1603 = vmatprep.mubr.bf16.mxu0 0
      %1604 = vmatmul.mubr.bf16.gmra.mxu0 %v1481
      %v1605 = vpop.f32.mrf.mxu0
      %v1606 = vadd.f32 0.0, %v1605
      %v1607 = vpop.f32.mrf.mxu0
      %v1608 = vpop.f32.mrf.mxu0
      %v1609 = vadd.f32 0.0, %v1608
      %v1610 = vpop.f32.mrf.mxu0
      %1611 = vdwg.mxu0
      %v1612 = vadd.f32 %v1462, %v1582
      %v1613 = vadd.f32 %v1463, %v1585
      %v1614 = vadd.f32 %v1464, %v1590
      %v1615 = vadd.f32 %v1465, %v1593
      %v1616 = vadd.f32 %v1466, %v1598
      %v1617 = vadd.f32 %v1467, %v1601
      %v1618 = vadd.f32 %v1468, %v1606
      %v1619 = vadd.f32 %v1469, %v1609
      %v1620 = vld [vmem:[%s2] sm:$0x1]
      %v1622 = vlaneseq
      %v1623 = vshrl.u32 %v1622, 7
      %v1624 = vsub.s32 0, %v1623
      %v1625 = vrot.slane %v1620, %v1624
      %v1627 = vadd.f32 %v1612, %v1625
      %v1628 = vadd.f32 %v1613, %v1625
      %v1629 = vadd.f32 %v1614, %v1625
      %v1630 = vadd.f32 %v1615, %v1625
      %v1631 = vadd.f32 %v1616, %v1625
      %v1632 = vadd.f32 %v1617, %v1625
      %v1633 = vadd.f32 %v1618, %v1625
      %v1634 = vadd.f32 %v1619, %v1625
      %vm1635 = vcmp.ge.f32.partialorder %v1627, 0.0
      %vm1636 = vcmp.ge.f32.partialorder %v1628, 0.0
      %vm1637 = vcmp.ge.f32.partialorder %v1629, 0.0
      %vm1638 = vcmp.ge.f32.partialorder %v1630, 0.0
      %vm1639 = vcmp.ge.f32.partialorder %v1631, 0.0
      %vm1640 = vcmp.ge.f32.partialorder %v1632, 0.0
      %vm1641 = vcmp.ge.f32.partialorder %v1633, 0.0
      %vm1642 = vcmp.ge.f32.partialorder %v1634, 0.0
      %v1643 = vld [vmem:[%s3] sm:$0x1]
      %v1645 = vlaneseq
      %v1646 = vshrl.u32 %v1645, 7
      %v1647 = vsub.s32 0, %v1646
      %v1648 = vrot.slane %v1643, %v1647
      %v1650 = vmul.f32 %v1648, %v1627
      %v1651 = vmul.f32 %v1648, %v1628
      %v1652 = vmul.f32 %v1648, %v1629
      %v1653 = vmul.f32 %v1648, %v1630
      %v1654 = vmul.f32 %v1648, %v1631
      %v1655 = vmul.f32 %v1648, %v1632
      %v1656 = vmul.f32 %v1648, %v1633
      %v1657 = vmul.f32 %v1648, %v1634
      %v1658 = vsel %vm1635, %v1627, %v1650
      %v1659 = vsel %vm1636, %v1628, %v1651
      %v1660 = vsel %vm1637, %v1629, %v1652
      %v1661 = vsel %vm1638, %v1630, %v1653
      %v1662 = vsel %vm1639, %v1631, %v1654
      %v1663 = vsel %vm1640, %v1632, %v1655
      %v1664 = vsel %vm1641, %v1633, %v1656
      %v1665 = vsel %vm1642, %v1634, %v1657
      %v1666 = vpack.c.bf16 %v1659, %v1658
      %v1667 = vpack.c.bf16 %v1661, %v1660
      %v1668 = vpack.c.bf16 %v1663, %v1662
      %v1669 = vpack.c.bf16 %v1665, %v1664
      %v1670 = vld [vmem:[%s4] sm:$0xf]
      %v1671 = vld [vmem:[%s4 + $0x4] sm:$0xf]
      %v1674 = vunpack.c.l.b16 %v1670
      %v1675 = vunpack.c.l.b16 %v1671
      %v1676 = vpack.c.b16 %v1675, %v1674
      %vm1677 = vcmask 523264
      %v1679 = vsel %vm1677, %v1676, 0
      %1681 = vmatprep.subr.bf16.mxu0 0
      %1682 = vmatpush1.bf16.msra.mxu0 0
      %1683 = vmatprep.subr.bf16.mxu0 0
      %1684 = vmatpush1.bf16.msra.mxu0 0
      %1685 = vmatprep.subr.bf16.mxu0 0
      %1686 = vmatpush1.bf16.msra.mxu0 0
      %1687 = vmatprep.subr.bf16.mxu0 0
      %1688 = vmatpush1.bf16.msra.mxu0 0
      %1689 = vmatprep.subr.bf16.mxu0 0
      %1690 = vmatpush1.bf16.msra.mxu0 %v1669
      %1691 = vmatprep.subr.bf16.mxu0 0
      %1692 = vmatpush1.bf16.msra.mxu0 %v1668
      %1693 = vmatprep.subr.bf16.mxu0 0
      %1694 = vmatpush1.bf16.msra.mxu0 %v1667
      %1695 = vmatprep.subr.bf16.mxu0 0
      %1696 = vmatpush1.bf16.msra.mxu0 %v1666
      %1697 = vmatprep.subr.bf16.mxu0 0
      %1698 = vmatpush2.bf16.msra.mxu0 0
      %1699 = vmatprep.subr.bf16.mxu0 0
      %1700 = vmatpush2.bf16.msra.mxu0 0
      %1701 = vmatprep.subr.bf16.mxu0 0
      %1702 = vmatpush2.bf16.msra.mxu0 0
      %1703 = vmatprep.subr.bf16.mxu0 0
      %1704 = vmatpush2.bf16.msra.mxu0 0
      %1705 = vmatprep.subr.bf16.mxu0 0
      %1706 = vmatpush2.bf16.msra.mxu0 0
      %1707 = vmatprep.subr.bf16.mxu0 0
      %1708 = vmatpush2.bf16.msra.mxu0 0
      %1709 = vmatprep.subr.bf16.mxu0 0
      %1710 = vmatpush2.bf16.msra.mxu0 0
      %1711 = vmatprep.subr.bf16.mxu0 0
      %1712 = vmatpush2.bf16.msra.mxu0 0
      %1713 = vmatprep.mubr.bf16.mxu0 0
      %1714 = vmatmul.mubr.bf16.gmra.mxu0 %v1679
      %v1715 = vpop.f32.mrf.mxu0
      %v1716 = vadd.f32 0.0, %v1715
      %v1717 = vpop.f32.mrf.mxu0
      %v1718 = vpop.f32.mrf.mxu0
      %v1719 = vadd.f32 0.0, %v1718
      %v1720 = vpop.f32.mrf.mxu0
      %1721 = vdwg.mxu0
      %v1722 = vpack.c.bf16 %v1719, %v1716
      %v1723 = vld [vmem:[%s5] sm:$0xf]
      %v1724 = vld [vmem:[%s5 + $0x4] sm:$0xf]
      %s1725 = scalar_lea.vmem %s4, 8
      %v1726 = vld [vmem:[%s1725] sm:$0xf]
      %v1727 = vld [vmem:[%s1725 + $0x4] sm:$0xf]
      %v1730 = vunpack.c.l.b16 %v1726
      %v1731 = vunpack.c.l.b16 %v1727
      %v1732 = vpack.c.b16 %v1731, %v1730
      %v1734 = vsel %vm1677, %v1732, 0
      %1736 = vmatprep.subr.bf16.mxu0 0
      %1737 = vmatpush1.bf16.msra.mxu0 0
      %1738 = vmatprep.subr.bf16.mxu0 0
      %1739 = vmatpush1.bf16.msra.mxu0 0
      %1740 = vmatprep.subr.bf16.mxu0 0
      %1741 = vmatpush1.bf16.msra.mxu0 0
      %1742 = vmatprep.subr.bf16.mxu0 0
      %1743 = vmatpush1.bf16.msra.mxu0 0
      %1744 = vmatprep.subr.bf16.mxu0 0
      %1745 = vmatpush1.bf16.msra.mxu0 %v1669
      %1746 = vmatprep.subr.bf16.mxu0 0
      %1747 = vmatpush1.bf16.msra.mxu0 %v1668
      %1748 = vmatprep.subr.bf16.mxu0 0
      %1749 = vmatpush1.bf16.msra.mxu0 %v1667
      %1750 = vmatprep.subr.bf16.mxu0 0
      %1751 = vmatpush1.bf16.msra.mxu0 %v1666
      %1752 = vmatprep.subr.bf16.mxu0 0
      %1753 = vmatpush2.bf16.msra.mxu0 0
      %1754 = vmatprep.subr.bf16.mxu0 0
      %1755 = vmatpush2.bf16.msra.mxu0 0
      %1756 = vmatprep.subr.bf16.mxu0 0
      %1757 = vmatpush2.bf16.msra.mxu0 0
      %1758 = vmatprep.subr.bf16.mxu0 0
      %1759 = vmatpush2.bf16.msra.mxu0 0
      %1760 = vmatprep.subr.bf16.mxu0 0
      %1761 = vmatpush2.bf16.msra.mxu0 0
      %1762 = vmatprep.subr.bf16.mxu0 0
      %1763 = vmatpush2.bf16.msra.mxu0 0
      %1764 = vmatprep.subr.bf16.mxu0 0
      %1765 = vmatpush2.bf16.msra.mxu0 0
      %1766 = vmatprep.subr.bf16.mxu0 0
      %1767 = vmatpush2.bf16.msra.mxu0 0
      %1768 = vmatprep.mubr.bf16.mxu0 0
      %1769 = vmatmul.mubr.bf16.gmra.mxu0 %v1734
      %v1770 = vpop.f32.mrf.mxu0
      %v1771 = vadd.f32 0.0, %v1770
      %v1772 = vpop.f32.mrf.mxu0
      %v1773 = vpop.f32.mrf.mxu0
      %v1774 = vadd.f32 0.0, %v1773
      %v1775 = vpop.f32.mrf.mxu0
      %1776 = vdwg.mxu0
      %v1777 = vpack.c.bf16 %v1774, %v1771
      %s1778 = scalar_lea.vmem %s5, 8
      %v1779 = vld [vmem:[%s1778] sm:$0xf]
      %v1780 = vld [vmem:[%s1778 + $0x4] sm:$0xf]
      %v1783 = vunpack.c.l.b16 %v1779
      %v1784 = vunpack.c.l.b16 %v1780
      %v1785 = vpack.c.b16 %v1784, %v1783
      %vm1787 = vcmask 130048
      %v1789 = vsel %vm1787, %v1777, 0
      %1791 = vmatprep.subr.bf16.mxu0 0
      %1792 = vmatpush1.bf16.msra.mxu0 0
      %1793 = vmatprep.subr.bf16.mxu0 0
      %1794 = vmatpush1.bf16.msra.mxu0 0
      %1795 = vmatprep.subr.bf16.mxu0 0
      %1796 = vmatpush1.bf16.msra.mxu0 0
      %1797 = vmatprep.subr.bf16.mxu0 0
      %1798 = vmatpush1.bf16.msra.mxu0 0
      %1799 = vmatprep.subr.bf16.mxu0 0
      %1800 = vmatpush1.bf16.msra.mxu0 0
      %1801 = vmatprep.subr.bf16.mxu0 0
      %1802 = vmatpush1.bf16.msra.mxu0 0
      %1803 = vmatprep.subr.bf16.mxu0 0
      %1804 = vmatpush1.bf16.msra.mxu0 0
      %1805 = vmatprep.subr.bf16.mxu0 0
      %1806 = vmatpush1.bf16.msra.mxu0 %v1785
      %1807 = vmatprep.subr.bf16.mxu0 0
      %1808 = vmatpush2.bf16.msra.mxu0 0
      %1809 = vmatprep.subr.bf16.mxu0 0
      %1810 = vmatpush2.bf16.msra.mxu0 0
      %1811 = vmatprep.subr.bf16.mxu0 0
      %1812 = vmatpush2.bf16.msra.mxu0 0
      %1813 = vmatprep.subr.bf16.mxu0 0
      %1814 = vmatpush2.bf16.msra.mxu0 0
      %1815 = vmatprep.subr.bf16.mxu0 0
      %1816 = vmatpush2.bf16.msra.mxu0 0
      %1817 = vmatprep.subr.bf16.mxu0 0
      %1818 = vmatpush2.bf16.msra.mxu0 0
      %1819 = vmatprep.subr.bf16.mxu0 0
      %1820 = vmatpush2.bf16.msra.mxu0 0
      %1821 = vmatprep.subr.bf16.mxu0 0
      %1822 = vmatpush2.bf16.msra.mxu0 0
      %1823 = vmatprep.mubr.bf16.mxu0 0
      %1824 = vmatmul.mubr.bf16.gmra.mxu0 %v1789
      %v1825 = vpop.f32.mrf.mxu0
      %v1826 = vadd.f32 0.0, %v1825
      %v1827 = vpop.f32.mrf.mxu0
      %v1828 = vpop.f32.mrf.mxu0
      %v1829 = vadd.f32 0.0, %v1828
      %v1830 = vpop.f32.mrf.mxu0
      %1831 = vdwg.mxu0
      %v1834 = vunpack.c.l.b16 %v1723
      %v1835 = vunpack.c.l.b16 %v1724
      %v1836 = vpack.c.b16 %v1835, %v1834
      %v1839 = vsel %vm1787, %v1722, 0
      %1841 = vmatprep.subr.bf16.mxu0 0
      %1842 = vmatpush1.bf16.msra.mxu0 0
      %1843 = vmatprep.subr.bf16.mxu0 0
      %1844 = vmatpush1.bf16.msra.mxu0 0
      %1845 = vmatprep.subr.bf16.mxu0 0
      %1846 = vmatpush1.bf16.msra.mxu0 0
      %1847 = vmatprep.subr.bf16.mxu0 0
      %1848 = vmatpush1.bf16.msra.mxu0 0
      %1849 = vmatprep.subr.bf16.mxu0 0
      %1850 = vmatpush1.bf16.msra.mxu0 0
      %1851 = vmatprep.subr.bf16.mxu0 0
      %1852 = vmatpush1.bf16.msra.mxu0 0
      %1853 = vmatprep.subr.bf16.mxu0 0
      %1854 = vmatpush1.bf16.msra.mxu0 0
      %1855 = vmatprep.subr.bf16.mxu0 0
      %1856 = vmatpush1.bf16.msra.mxu0 %v1836
      %1857 = vmatprep.subr.bf16.mxu0 0
      %1858 = vmatpush2.bf16.msra.mxu0 0
      %1859 = vmatprep.subr.bf16.mxu0 0
      %1860 = vmatpush2.bf16.msra.mxu0 0
      %1861 = vmatprep.subr.bf16.mxu0 0
      %1862 = vmatpush2.bf16.msra.mxu0 0
      %1863 = vmatprep.subr.bf16.mxu0 0
      %1864 = vmatpush2.bf16.msra.mxu0 0
      %1865 = vmatprep.subr.bf16.mxu0 0
      %1866 = vmatpush2.bf16.msra.mxu0 0
      %1867 = vmatprep.subr.bf16.mxu0 0
      %1868 = vmatpush2.bf16.msra.mxu0 0
      %1869 = vmatprep.subr.bf16.mxu0 0
      %1870 = vmatpush2.bf16.msra.mxu0 0
      %1871 = vmatprep.subr.bf16.mxu0 0
      %1872 = vmatpush2.bf16.msra.mxu0 0
      %1873 = vmatprep.mubr.bf16.mxu0 0
      %1874 = vmatmul.mubr.bf16.gmra.mxu0 %v1839
      %v1875 = vpop.f32.mrf.mxu0
      %v1876 = vadd.f32 %v1826, %v1875
      %v1877 = vpop.f32.mrf.mxu0
      %v1878 = vpop.f32.mrf.mxu0
      %v1879 = vadd.f32 %v1829, %v1878
      %v1880 = vpop.f32.mrf.mxu0
      %1881 = vdwg.mxu0
      %s1882 = scalar_lea.vmem %s4, 16
      %v1883 = vld [vmem:[%s1882] sm:$0xf]
      %v1884 = vld [vmem:[%s1882 + $0x4] sm:$0xf]
      %v1887 = vunpack.c.l.b16 %v1883
      %v1888 = vunpack.c.l.b16 %v1884
      %v1889 = vpack.c.b16 %v1888, %v1887
      %v1891 = vsel %vm1677, %v1889, 0
      %1893 = vmatprep.subr.bf16.mxu0 0
      %1894 = vmatpush1.bf16.msra.mxu0 0
      %1895 = vmatprep.subr.bf16.mxu0 0
      %1896 = vmatpush1.bf16.msra.mxu0 0
      %1897 = vmatprep.subr.bf16.mxu0 0
      %1898 = vmatpush1.bf16.msra.mxu0 0
      %1899 = vmatprep.subr.bf16.mxu0 0
      %1900 = vmatpush1.bf16.msra.mxu0 0
      %1901 = vmatprep.subr.bf16.mxu0 0
      %1902 = vmatpush1.bf16.msra.mxu0 %v1669
      %1903 = vmatprep.subr.bf16.mxu0 0
      %1904 = vmatpush1.bf16.msra.mxu0 %v1668
      %1905 = vmatprep.subr.bf16.mxu0 0
      %1906 = vmatpush1.bf16.msra.mxu0 %v1667
      %1907 = vmatprep.subr.bf16.mxu0 0
      %1908 = vmatpush1.bf16.msra.mxu0 %v1666
      %1909 = vmatprep.subr.bf16.mxu0 0
      %1910 = vmatpush2.bf16.msra.mxu0 0
      %1911 = vmatprep.subr.bf16.mxu0 0
      %1912 = vmatpush2.bf16.msra.mxu0 0
      %1913 = vmatprep.subr.bf16.mxu0 0
      %1914 = vmatpush2.bf16.msra.mxu0 0
      %1915 = vmatprep.subr.bf16.mxu0 0
      %1916 = vmatpush2.bf16.msra.mxu0 0
      %1917 = vmatprep.subr.bf16.mxu0 0
      %1918 = vmatpush2.bf16.msra.mxu0 0
      %1919 = vmatprep.subr.bf16.mxu0 0
      %1920 = vmatpush2.bf16.msra.mxu0 0
      %1921 = vmatprep.subr.bf16.mxu0 0
      %1922 = vmatpush2.bf16.msra.mxu0 0
      %1923 = vmatprep.subr.bf16.mxu0 0
      %1924 = vmatpush2.bf16.msra.mxu0 0
      %1925 = vmatprep.mubr.bf16.mxu0 0
      %1926 = vmatmul.mubr.bf16.gmra.mxu0 %v1891
      %v1927 = vpop.f32.mrf.mxu0
      %v1928 = vadd.f32 0.0, %v1927
      %v1929 = vpop.f32.mrf.mxu0
      %v1930 = vpop.f32.mrf.mxu0
      %v1931 = vadd.f32 0.0, %v1930
      %v1932 = vpop.f32.mrf.mxu0
      %1933 = vdwg.mxu0
      %v1934 = vpack.c.bf16 %v1931, %v1928
      %s1935 = scalar_lea.vmem %s5, 16
      %v1936 = vld [vmem:[%s1935] sm:$0xf]
      %v1937 = vld [vmem:[%s1935 + $0x4] sm:$0xf]
      %v1940 = vunpack.c.l.b16 %v1936
      %v1941 = vunpack.c.l.b16 %v1937
      %v1942 = vpack.c.b16 %v1941, %v1940
      %v1945 = vsel %vm1787, %v1934, 0
      %1947 = vmatprep.subr.bf16.mxu0 0
      %1948 = vmatpush1.bf16.msra.mxu0 0
      %1949 = vmatprep.subr.bf16.mxu0 0
      %1950 = vmatpush1.bf16.msra.mxu0 0
      %1951 = vmatprep.subr.bf16.mxu0 0
      %1952 = vmatpush1.bf16.msra.mxu0 0
      %1953 = vmatprep.subr.bf16.mxu0 0
      %1954 = vmatpush1.bf16.msra.mxu0 0
      %1955 = vmatprep.subr.bf16.mxu0 0
      %1956 = vmatpush1.bf16.msra.mxu0 0
      %1957 = vmatprep.subr.bf16.mxu0 0
      %1958 = vmatpush1.bf16.msra.mxu0 0
      %1959 = vmatprep.subr.bf16.mxu0 0
      %1960 = vmatpush1.bf16.msra.mxu0 0
      %1961 = vmatprep.subr.bf16.mxu0 0
      %1962 = vmatpush1.bf16.msra.mxu0 %v1942
      %1963 = vmatprep.subr.bf16.mxu0 0
      %1964 = vmatpush2.bf16.msra.mxu0 0
      %1965 = vmatprep.subr.bf16.mxu0 0
      %1966 = vmatpush2.bf16.msra.mxu0 0
      %1967 = vmatprep.subr.bf16.mxu0 0
      %1968 = vmatpush2.bf16.msra.mxu0 0
      %1969 = vmatprep.subr.bf16.mxu0 0
      %1970 = vmatpush2.bf16.msra.mxu0 0
      %1971 = vmatprep.subr.bf16.mxu0 0
      %1972 = vmatpush2.bf16.msra.mxu0 0
      %1973 = vmatprep.subr.bf16.mxu0 0
      %1974 = vmatpush2.bf16.msra.mxu0 0
      %1975 = vmatprep.subr.bf16.mxu0 0
      %1976 = vmatpush2.bf16.msra.mxu0 0
      %1977 = vmatprep.subr.bf16.mxu0 0
      %1978 = vmatpush2.bf16.msra.mxu0 0
      %1979 = vmatprep.mubr.bf16.mxu0 0
      %1980 = vmatmul.mubr.bf16.gmra.mxu0 %v1945
      %v1981 = vpop.f32.mrf.mxu0
      %v1982 = vadd.f32 0.0, %v1981
      %v1983 = vpop.f32.mrf.mxu0
      %v1984 = vpop.f32.mrf.mxu0
      %v1985 = vadd.f32 0.0, %v1984
      %v1986 = vpop.f32.mrf.mxu0
      %1987 = vdwg.mxu0
      %v1988 = vadd.f32 %v1876, %v1982
      %v1989 = vadd.f32 %v1879, %v1985
      %s1990 = scalar_lea.vmem %s4, 24
      %v1991 = vld [vmem:[%s1990] sm:$0xf]
      %v1992 = vld [vmem:[%s1990 + $0x4] sm:$0xf]
      %v1995 = vunpack.c.l.b16 %v1991
      %v1996 = vunpack.c.l.b16 %v1992
      %v1997 = vpack.c.b16 %v1996, %v1995
      %v1999 = vsel %vm1677, %v1997, 0
      %2001 = vmatprep.subr.bf16.mxu0 0
      %2002 = vmatpush1.bf16.msra.mxu0 0
      %2003 = vmatprep.subr.bf16.mxu0 0
      %2004 = vmatpush1.bf16.msra.mxu0 0
      %2005 = vmatprep.subr.bf16.mxu0 0
      %2006 = vmatpush1.bf16.msra.mxu0 0
      %2007 = vmatprep.subr.bf16.mxu0 0
      %2008 = vmatpush1.bf16.msra.mxu0 0
      %2009 = vmatprep.subr.bf16.mxu0 0
      %2010 = vmatpush1.bf16.msra.mxu0 %v1669
      %2011 = vmatprep.subr.bf16.mxu0 0
      %2012 = vmatpush1.bf16.msra.mxu0 %v1668
      %2013 = vmatprep.subr.bf16.mxu0 0
      %2014 = vmatpush1.bf16.msra.mxu0 %v1667
      %2015 = vmatprep.subr.bf16.mxu0 0
      %2016 = vmatpush1.bf16.msra.mxu0 %v1666
      %2017 = vmatprep.subr.bf16.mxu0 0
      %2018 = vmatpush2.bf16.msra.mxu0 0
      %2019 = vmatprep.subr.bf16.mxu0 0
      %2020 = vmatpush2.bf16.msra.mxu0 0
      %2021 = vmatprep.subr.bf16.mxu0 0
      %2022 = vmatpush2.bf16.msra.mxu0 0
      %2023 = vmatprep.subr.bf16.mxu0 0
      %2024 = vmatpush2.bf16.msra.mxu0 0
      %2025 = vmatprep.subr.bf16.mxu0 0
      %2026 = vmatpush2.bf16.msra.mxu0 0
      %2027 = vmatprep.subr.bf16.mxu0 0
      %2028 = vmatpush2.bf16.msra.mxu0 0
      %2029 = vmatprep.subr.bf16.mxu0 0
      %2030 = vmatpush2.bf16.msra.mxu0 0
      %2031 = vmatprep.subr.bf16.mxu0 0
      %2032 = vmatpush2.bf16.msra.mxu0 0
      %2033 = vmatprep.mubr.bf16.mxu0 0
      %2034 = vmatmul.mubr.bf16.gmra.mxu0 %v1999
      %v2035 = vpop.f32.mrf.mxu0
      %v2036 = vadd.f32 0.0, %v2035
      %v2037 = vpop.f32.mrf.mxu0
      %v2038 = vpop.f32.mrf.mxu0
      %v2039 = vadd.f32 0.0, %v2038
      %v2040 = vpop.f32.mrf.mxu0
      %2041 = vdwg.mxu0
      %v2042 = vpack.c.bf16 %v2039, %v2036
      %s2043 = scalar_lea.vmem %s5, 24
      %v2044 = vld [vmem:[%s2043] sm:$0xf]
      %v2045 = vld [vmem:[%s2043 + $0x4] sm:$0xf]
      %v2048 = vunpack.c.l.b16 %v2044
      %v2049 = vunpack.c.l.b16 %v2045
      %v2050 = vpack.c.b16 %v2049, %v2048
      %v2053 = vsel %vm1787, %v2042, 0
      %2055 = vmatprep.subr.bf16.mxu0 0
      %2056 = vmatpush1.bf16.msra.mxu0 0
      %2057 = vmatprep.subr.bf16.mxu0 0
      %2058 = vmatpush1.bf16.msra.mxu0 0
      %2059 = vmatprep.subr.bf16.mxu0 0
      %2060 = vmatpush1.bf16.msra.mxu0 0
      %2061 = vmatprep.subr.bf16.mxu0 0
      %2062 = vmatpush1.bf16.msra.mxu0 0
      %2063 = vmatprep.subr.bf16.mxu0 0
      %2064 = vmatpush1.bf16.msra.mxu0 0
      %2065 = vmatprep.subr.bf16.mxu0 0
      %2066 = vmatpush1.bf16.msra.mxu0 0
      %2067 = vmatprep.subr.bf16.mxu0 0
      %2068 = vmatpush1.bf16.msra.mxu0 0
      %2069 = vmatprep.subr.bf16.mxu0 0
      %2070 = vmatpush1.bf16.msra.mxu0 %v2050
      %2071 = vmatprep.subr.bf16.mxu0 0
      %2072 = vmatpush2.bf16.msra.mxu0 0
      %2073 = vmatprep.subr.bf16.mxu0 0
      %2074 = vmatpush2.bf16.msra.mxu0 0
      %2075 = vmatprep.subr.bf16.mxu0 0
      %2076 = vmatpush2.bf16.msra.mxu0 0
      %2077 = vmatprep.subr.bf16.mxu0 0
      %2078 = vmatpush2.bf16.msra.mxu0 0
      %2079 = vmatprep.subr.bf16.mxu0 0
      %2080 = vmatpush2.bf16.msra.mxu0 0
      %2081 = vmatprep.subr.bf16.mxu0 0
      %2082 = vmatpush2.bf16.msra.mxu0 0
      %2083 = vmatprep.subr.bf16.mxu0 0
      %2084 = vmatpush2.bf16.msra.mxu0 0
      %2085 = vmatprep.subr.bf16.mxu0 0
      %2086 = vmatpush2.bf16.msra.mxu0 0
      %2087 = vmatprep.mubr.bf16.mxu0 0
      %2088 = vmatmul.mubr.bf16.gmra.mxu0 %v2053
      %v2089 = vpop.f32.mrf.mxu0
      %v2090 = vadd.f32 0.0, %v2089
      %v2091 = vpop.f32.mrf.mxu0
      %v2092 = vpop.f32.mrf.mxu0
      %v2093 = vadd.f32 0.0, %v2092
      %v2094 = vpop.f32.mrf.mxu0
      %2095 = vdwg.mxu0
      %v2096 = vadd.f32 %v1988, %v2090
      %v2097 = vadd.f32 %v1989, %v2093
      %s2098 = scalar_lea.vmem %s4, 32
      %v2099 = vld [vmem:[%s2098] sm:$0xf]
      %v2100 = vld [vmem:[%s2098 + $0x4] sm:$0xf]
      %v2103 = vunpack.c.l.b16 %v2099
      %v2104 = vunpack.c.l.b16 %v2100
      %v2105 = vpack.c.b16 %v2104, %v2103
      %v2107 = vsel %vm1677, %v2105, 0
      %2109 = vmatprep.subr.bf16.mxu0 0
      %2110 = vmatpush1.bf16.msra.mxu0 0
      %2111 = vmatprep.subr.bf16.mxu0 0
      %2112 = vmatpush1.bf16.msra.mxu0 0
      %2113 = vmatprep.subr.bf16.mxu0 0
      %2114 = vmatpush1.bf16.msra.mxu0 0
      %2115 = vmatprep.subr.bf16.mxu0 0
      %2116 = vmatpush1.bf16.msra.mxu0 0
      %2117 = vmatprep.subr.bf16.mxu0 0
      %2118 = vmatpush1.bf16.msra.mxu0 %v1669
      %2119 = vmatprep.subr.bf16.mxu0 0
      %2120 = vmatpush1.bf16.msra.mxu0 %v1668
      %2121 = vmatprep.subr.bf16.mxu0 0
      %2122 = vmatpush1.bf16.msra.mxu0 %v1667
      %2123 = vmatprep.subr.bf16.mxu0 0
      %2124 = vmatpush1.bf16.msra.mxu0 %v1666
      %2125 = vmatprep.subr.bf16.mxu0 0
      %2126 = vmatpush2.bf16.msra.mxu0 0
      %2127 = vmatprep.subr.bf16.mxu0 0
      %2128 = vmatpush2.bf16.msra.mxu0 0
      %2129 = vmatprep.subr.bf16.mxu0 0
      %2130 = vmatpush2.bf16.msra.mxu0 0
      %2131 = vmatprep.subr.bf16.mxu0 0
      %2132 = vmatpush2.bf16.msra.mxu0 0
      %2133 = vmatprep.subr.bf16.mxu0 0
      %2134 = vmatpush2.bf16.msra.mxu0 0
      %2135 = vmatprep.subr.bf16.mxu0 0
      %2136 = vmatpush2.bf16.msra.mxu0 0
      %2137 = vmatprep.subr.bf16.mxu0 0
      %2138 = vmatpush2.bf16.msra.mxu0 0
      %2139 = vmatprep.subr.bf16.mxu0 0
      %2140 = vmatpush2.bf16.msra.mxu0 0
      %2141 = vmatprep.mubr.bf16.mxu0 0
      %2142 = vmatmul.mubr.bf16.gmra.mxu0 %v2107
      %v2143 = vpop.f32.mrf.mxu0
      %v2144 = vadd.f32 0.0, %v2143
      %v2145 = vpop.f32.mrf.mxu0
      %v2146 = vpop.f32.mrf.mxu0
      %v2147 = vadd.f32 0.0, %v2146
      %v2148 = vpop.f32.mrf.mxu0
      %2149 = vdwg.mxu0
      %v2150 = vpack.c.bf16 %v2147, %v2144
      %s2151 = scalar_lea.vmem %s5, 32
      %v2152 = vld [vmem:[%s2151] sm:$0xf]
      %v2153 = vld [vmem:[%s2151 + $0x4] sm:$0xf]
      %v2156 = vunpack.c.l.b16 %v2152
      %v2157 = vunpack.c.l.b16 %v2153
      %v2158 = vpack.c.b16 %v2157, %v2156
      %v2161 = vsel %vm1787, %v2150, 0
      %2163 = vmatprep.subr.bf16.mxu0 0
      %2164 = vmatpush1.bf16.msra.mxu0 0
      %2165 = vmatprep.subr.bf16.mxu0 0
      %2166 = vmatpush1.bf16.msra.mxu0 0
      %2167 = vmatprep.subr.bf16.mxu0 0
      %2168 = vmatpush1.bf16.msra.mxu0 0
      %2169 = vmatprep.subr.bf16.mxu0 0
      %2170 = vmatpush1.bf16.msra.mxu0 0
      %2171 = vmatprep.subr.bf16.mxu0 0
      %2172 = vmatpush1.bf16.msra.mxu0 0
      %2173 = vmatprep.subr.bf16.mxu0 0
      %2174 = vmatpush1.bf16.msra.mxu0 0
      %2175 = vmatprep.subr.bf16.mxu0 0
      %2176 = vmatpush1.bf16.msra.mxu0 0
      %2177 = vmatprep.subr.bf16.mxu0 0
      %2178 = vmatpush1.bf16.msra.mxu0 %v2158
      %2179 = vmatprep.subr.bf16.mxu0 0
      %2180 = vmatpush2.bf16.msra.mxu0 0
      %2181 = vmatprep.subr.bf16.mxu0 0
      %2182 = vmatpush2.bf16.msra.mxu0 0
      %2183 = vmatprep.subr.bf16.mxu0 0
      %2184 = vmatpush2.bf16.msra.mxu0 0
      %2185 = vmatprep.subr.bf16.mxu0 0
      %2186 = vmatpush2.bf16.msra.mxu0 0
      %2187 = vmatprep.subr.bf16.mxu0 0
      %2188 = vmatpush2.bf16.msra.mxu0 0
      %2189 = vmatprep.subr.bf16.mxu0 0
      %2190 = vmatpush2.bf16.msra.mxu0 0
      %2191 = vmatprep.subr.bf16.mxu0 0
      %2192 = vmatpush2.bf16.msra.mxu0 0
      %2193 = vmatprep.subr.bf16.mxu0 0
      %2194 = vmatpush2.bf16.msra.mxu0 0
      %2195 = vmatprep.mubr.bf16.mxu0 0
      %2196 = vmatmul.mubr.bf16.gmra.mxu0 %v2161
      %v2197 = vpop.f32.mrf.mxu0
      %v2198 = vadd.f32 0.0, %v2197
      %v2199 = vpop.f32.mrf.mxu0
      %v2200 = vpop.f32.mrf.mxu0
      %v2201 = vadd.f32 0.0, %v2200
      %v2202 = vpop.f32.mrf.mxu0
      %2203 = vdwg.mxu0
      %v2204 = vadd.f32 %v2096, %v2198
      %v2205 = vadd.f32 %v2097, %v2201
      %s2206 = scalar_lea.vmem %s4, 40
      %v2207 = vld [vmem:[%s2206] sm:$0xf]
      %v2208 = vld [vmem:[%s2206 + $0x4] sm:$0xf]
      %v2211 = vunpack.c.l.b16 %v2207
      %v2212 = vunpack.c.l.b16 %v2208
      %v2213 = vpack.c.b16 %v2212, %v2211
      %v2215 = vsel %vm1677, %v2213, 0
      %2217 = vmatprep.subr.bf16.mxu0 0
      %2218 = vmatpush1.bf16.msra.mxu0 0
      %2219 = vmatprep.subr.bf16.mxu0 0
      %2220 = vmatpush1.bf16.msra.mxu0 0
      %2221 = vmatprep.subr.bf16.mxu0 0
      %2222 = vmatpush1.bf16.msra.mxu0 0
      %2223 = vmatprep.subr.bf16.mxu0 0
      %2224 = vmatpush1.bf16.msra.mxu0 0
      %2225 = vmatprep.subr.bf16.mxu0 0
      %2226 = vmatpush1.bf16.msra.mxu0 %v1669
      %2227 = vmatprep.subr.bf16.mxu0 0
      %2228 = vmatpush1.bf16.msra.mxu0 %v1668
      %2229 = vmatprep.subr.bf16.mxu0 0
      %2230 = vmatpush1.bf16.msra.mxu0 %v1667
      %2231 = vmatprep.subr.bf16.mxu0 0
      %2232 = vmatpush1.bf16.msra.mxu0 %v1666
      %2233 = vmatprep.subr.bf16.mxu0 0
      %2234 = vmatpush2.bf16.msra.mxu0 0
      %2235 = vmatprep.subr.bf16.mxu0 0
      %2236 = vmatpush2.bf16.msra.mxu0 0
      %2237 = vmatprep.subr.bf16.mxu0 0
      %2238 = vmatpush2.bf16.msra.mxu0 0
      %2239 = vmatprep.subr.bf16.mxu0 0
      %2240 = vmatpush2.bf16.msra.mxu0 0
      %2241 = vmatprep.subr.bf16.mxu0 0
      %2242 = vmatpush2.bf16.msra.mxu0 0
      %2243 = vmatprep.subr.bf16.mxu0 0
      %2244 = vmatpush2.bf16.msra.mxu0 0
      %2245 = vmatprep.subr.bf16.mxu0 0
      %2246 = vmatpush2.bf16.msra.mxu0 0
      %2247 = vmatprep.subr.bf16.mxu0 0
      %2248 = vmatpush2.bf16.msra.mxu0 0
      %2249 = vmatprep.mubr.bf16.mxu0 0
      %2250 = vmatmul.mubr.bf16.gmra.mxu0 %v2215
      %v2251 = vpop.f32.mrf.mxu0
      %v2252 = vadd.f32 0.0, %v2251
      %v2253 = vpop.f32.mrf.mxu0
      %v2254 = vpop.f32.mrf.mxu0
      %v2255 = vadd.f32 0.0, %v2254
      %v2256 = vpop.f32.mrf.mxu0
      %2257 = vdwg.mxu0
      %v2258 = vpack.c.bf16 %v2255, %v2252
      %s2259 = scalar_lea.vmem %s5, 40
      %v2260 = vld [vmem:[%s2259] sm:$0xf]
      %v2261 = vld [vmem:[%s2259 + $0x4] sm:$0xf]
      %v2264 = vunpack.c.l.b16 %v2260
      %v2265 = vunpack.c.l.b16 %v2261
      %v2266 = vpack.c.b16 %v2265, %v2264
      %v2269 = vsel %vm1787, %v2258, 0
      %2271 = vmatprep.subr.bf16.mxu0 0
      %2272 = vmatpush1.bf16.msra.mxu0 0
      %2273 = vmatprep.subr.bf16.mxu0 0
      %2274 = vmatpush1.bf16.msra.mxu0 0
      %2275 = vmatprep.subr.bf16.mxu0 0
      %2276 = vmatpush1.bf16.msra.mxu0 0
      %2277 = vmatprep.subr.bf16.mxu0 0
      %2278 = vmatpush1.bf16.msra.mxu0 0
      %2279 = vmatprep.subr.bf16.mxu0 0
      %2280 = vmatpush1.bf16.msra.mxu0 0
      %2281 = vmatprep.subr.bf16.mxu0 0
      %2282 = vmatpush1.bf16.msra.mxu0 0
      %2283 = vmatprep.subr.bf16.mxu0 0
      %2284 = vmatpush1.bf16.msra.mxu0 0
      %2285 = vmatprep.subr.bf16.mxu0 0
      %2286 = vmatpush1.bf16.msra.mxu0 %v2266
      %2287 = vmatprep.subr.bf16.mxu0 0
      %2288 = vmatpush2.bf16.msra.mxu0 0
      %2289 = vmatprep.subr.bf16.mxu0 0
      %2290 = vmatpush2.bf16.msra.mxu0 0
      %2291 = vmatprep.subr.bf16.mxu0 0
      %2292 = vmatpush2.bf16.msra.mxu0 0
      %2293 = vmatprep.subr.bf16.mxu0 0
      %2294 = vmatpush2.bf16.msra.mxu0 0
      %2295 = vmatprep.subr.bf16.mxu0 0
      %2296 = vmatpush2.bf16.msra.mxu0 0
      %2297 = vmatprep.subr.bf16.mxu0 0
      %2298 = vmatpush2.bf16.msra.mxu0 0
      %2299 = vmatprep.subr.bf16.mxu0 0
      %2300 = vmatpush2.bf16.msra.mxu0 0
      %2301 = vmatprep.subr.bf16.mxu0 0
      %2302 = vmatpush2.bf16.msra.mxu0 0
      %2303 = vmatprep.mubr.bf16.mxu0 0
      %2304 = vmatmul.mubr.bf16.gmra.mxu0 %v2269
      %v2305 = vpop.f32.mrf.mxu0
      %v2306 = vadd.f32 0.0, %v2305
      %v2307 = vpop.f32.mrf.mxu0
      %v2308 = vpop.f32.mrf.mxu0
      %v2309 = vadd.f32 0.0, %v2308
      %v2310 = vpop.f32.mrf.mxu0
      %2311 = vdwg.mxu0
      %v2312 = vadd.f32 %v2204, %v2306
      %v2313 = vadd.f32 %v2205, %v2309
      %s2314 = scalar_lea.vmem %s4, 48
      %v2315 = vld [vmem:[%s2314] sm:$0xf]
      %v2316 = vld [vmem:[%s2314 + $0x4] sm:$0xf]
      %v2319 = vunpack.c.l.b16 %v2315
      %v2320 = vunpack.c.l.b16 %v2316
      %v2321 = vpack.c.b16 %v2320, %v2319
      %v2323 = vsel %vm1677, %v2321, 0
      %2325 = vmatprep.subr.bf16.mxu0 0
      %2326 = vmatpush1.bf16.msra.mxu0 0
      %2327 = vmatprep.subr.bf16.mxu0 0
      %2328 = vmatpush1.bf16.msra.mxu0 0
      %2329 = vmatprep.subr.bf16.mxu0 0
      %2330 = vmatpush1.bf16.msra.mxu0 0
      %2331 = vmatprep.subr.bf16.mxu0 0
      %2332 = vmatpush1.bf16.msra.mxu0 0
      %2333 = vmatprep.subr.bf16.mxu0 0
      %2334 = vmatpush1.bf16.msra.mxu0 %v1669
      %2335 = vmatprep.subr.bf16.mxu0 0
      %2336 = vmatpush1.bf16.msra.mxu0 %v1668
      %2337 = vmatprep.subr.bf16.mxu0 0
      %2338 = vmatpush1.bf16.msra.mxu0 %v1667
      %2339 = vmatprep.subr.bf16.mxu0 0
      %2340 = vmatpush1.bf16.msra.mxu0 %v1666
      %2341 = vmatprep.subr.bf16.mxu0 0
      %2342 = vmatpush2.bf16.msra.mxu0 0
      %2343 = vmatprep.subr.bf16.mxu0 0
      %2344 = vmatpush2.bf16.msra.mxu0 0
      %2345 = vmatprep.subr.bf16.mxu0 0
      %2346 = vmatpush2.bf16.msra.mxu0 0
      %2347 = vmatprep.subr.bf16.mxu0 0
      %2348 = vmatpush2.bf16.msra.mxu0 0
      %2349 = vmatprep.subr.bf16.mxu0 0
      %2350 = vmatpush2.bf16.msra.mxu0 0
      %2351 = vmatprep.subr.bf16.mxu0 0
      %2352 = vmatpush2.bf16.msra.mxu0 0
      %2353 = vmatprep.subr.bf16.mxu0 0
      %2354 = vmatpush2.bf16.msra.mxu0 0
      %2355 = vmatprep.subr.bf16.mxu0 0
      %2356 = vmatpush2.bf16.msra.mxu0 0
      %2357 = vmatprep.mubr.bf16.mxu0 0
      %2358 = vmatmul.mubr.bf16.gmra.mxu0 %v2323
      %v2359 = vpop.f32.mrf.mxu0
      %v2360 = vadd.f32 0.0, %v2359
      %v2361 = vpop.f32.mrf.mxu0
      %v2362 = vpop.f32.mrf.mxu0
      %v2363 = vadd.f32 0.0, %v2362
      %v2364 = vpop.f32.mrf.mxu0
      %2365 = vdwg.mxu0
      %v2366 = vpack.c.bf16 %v2363, %v2360
      %s2367 = scalar_lea.vmem %s5, 48
      %v2368 = vld [vmem:[%s2367] sm:$0xf]
      %v2369 = vld [vmem:[%s2367 + $0x4] sm:$0xf]
      %v2372 = vunpack.c.l.b16 %v2368
      %v2373 = vunpack.c.l.b16 %v2369
      %v2374 = vpack.c.b16 %v2373, %v2372
      %v2377 = vsel %vm1787, %v2366, 0
      %2379 = vmatprep.subr.bf16.mxu0 0
      %2380 = vmatpush1.bf16.msra.mxu0 0
      %2381 = vmatprep.subr.bf16.mxu0 0
      %2382 = vmatpush1.bf16.msra.mxu0 0
      %2383 = vmatprep.subr.bf16.mxu0 0
      %2384 = vmatpush1.bf16.msra.mxu0 0
      %2385 = vmatprep.subr.bf16.mxu0 0
      %2386 = vmatpush1.bf16.msra.mxu0 0
      %2387 = vmatprep.subr.bf16.mxu0 0
      %2388 = vmatpush1.bf16.msra.mxu0 0
      %2389 = vmatprep.subr.bf16.mxu0 0
      %2390 = vmatpush1.bf16.msra.mxu0 0
      %2391 = vmatprep.subr.bf16.mxu0 0
      %2392 = vmatpush1.bf16.msra.mxu0 0
      %2393 = vmatprep.subr.bf16.mxu0 0
      %2394 = vmatpush1.bf16.msra.mxu0 %v2374
      %2395 = vmatprep.subr.bf16.mxu0 0
      %2396 = vmatpush2.bf16.msra.mxu0 0
      %2397 = vmatprep.subr.bf16.mxu0 0
      %2398 = vmatpush2.bf16.msra.mxu0 0
      %2399 = vmatprep.subr.bf16.mxu0 0
      %2400 = vmatpush2.bf16.msra.mxu0 0
      %2401 = vmatprep.subr.bf16.mxu0 0
      %2402 = vmatpush2.bf16.msra.mxu0 0
      %2403 = vmatprep.subr.bf16.mxu0 0
      %2404 = vmatpush2.bf16.msra.mxu0 0
      %2405 = vmatprep.subr.bf16.mxu0 0
      %2406 = vmatpush2.bf16.msra.mxu0 0
      %2407 = vmatprep.subr.bf16.mxu0 0
      %2408 = vmatpush2.bf16.msra.mxu0 0
      %2409 = vmatprep.subr.bf16.mxu0 0
      %2410 = vmatpush2.bf16.msra.mxu0 0
      %2411 = vmatprep.mubr.bf16.mxu0 0
      %2412 = vmatmul.mubr.bf16.gmra.mxu0 %v2377
      %v2413 = vpop.f32.mrf.mxu0
      %v2414 = vadd.f32 0.0, %v2413
      %v2415 = vpop.f32.mrf.mxu0
      %v2416 = vpop.f32.mrf.mxu0
      %v2417 = vadd.f32 0.0, %v2416
      %v2418 = vpop.f32.mrf.mxu0
      %2419 = vdwg.mxu0
      %v2420 = vadd.f32 %v2312, %v2414
      %v2421 = vadd.f32 %v2313, %v2417
      %s2422 = scalar_lea.vmem %s4, 56
      %v2423 = vld [vmem:[%s2422] sm:$0xf]
      %v2424 = vld [vmem:[%s2422 + $0x4] sm:$0xf]
      %v2427 = vunpack.c.l.b16 %v2423
      %v2428 = vunpack.c.l.b16 %v2424
      %v2429 = vpack.c.b16 %v2428, %v2427
      %v2431 = vsel %vm1677, %v2429, 0
      %2433 = vmatprep.subr.bf16.mxu0 0
      %2434 = vmatpush1.bf16.msra.mxu0 0
      %2435 = vmatprep.subr.bf16.mxu0 0
      %2436 = vmatpush1.bf16.msra.mxu0 0
      %2437 = vmatprep.subr.bf16.mxu0 0
      %2438 = vmatpush1.bf16.msra.mxu0 0
      %2439 = vmatprep.subr.bf16.mxu0 0
      %2440 = vmatpush1.bf16.msra.mxu0 0
      %2441 = vmatprep.subr.bf16.mxu0 0
      %2442 = vmatpush1.bf16.msra.mxu0 %v1669
      %2443 = vmatprep.subr.bf16.mxu0 0
      %2444 = vmatpush1.bf16.msra.mxu0 %v1668
      %2445 = vmatprep.subr.bf16.mxu0 0
      %2446 = vmatpush1.bf16.msra.mxu0 %v1667
      %2447 = vmatprep.subr.bf16.mxu0 0
      %2448 = vmatpush1.bf16.msra.mxu0 %v1666
      %2449 = vmatprep.subr.bf16.mxu0 0
      %2450 = vmatpush2.bf16.msra.mxu0 0
      %2451 = vmatprep.subr.bf16.mxu0 0
      %2452 = vmatpush2.bf16.msra.mxu0 0
      %2453 = vmatprep.subr.bf16.mxu0 0
      %2454 = vmatpush2.bf16.msra.mxu0 0
      %2455 = vmatprep.subr.bf16.mxu0 0
      %2456 = vmatpush2.bf16.msra.mxu0 0
      %2457 = vmatprep.subr.bf16.mxu0 0
      %2458 = vmatpush2.bf16.msra.mxu0 0
      %2459 = vmatprep.subr.bf16.mxu0 0
      %2460 = vmatpush2.bf16.msra.mxu0 0
      %2461 = vmatprep.subr.bf16.mxu0 0
      %2462 = vmatpush2.bf16.msra.mxu0 0
      %2463 = vmatprep.subr.bf16.mxu0 0
      %2464 = vmatpush2.bf16.msra.mxu0 0
      %2465 = vmatprep.mubr.bf16.mxu0 0
      %2466 = vmatmul.mubr.bf16.gmra.mxu0 %v2431
      %v2467 = vpop.f32.mrf.mxu0
      %v2468 = vadd.f32 0.0, %v2467
      %v2469 = vpop.f32.mrf.mxu0
      %v2470 = vpop.f32.mrf.mxu0
      %v2471 = vadd.f32 0.0, %v2470
      %v2472 = vpop.f32.mrf.mxu0
      %2473 = vdwg.mxu0
      %v2474 = vpack.c.bf16 %v2471, %v2468
      %s2475 = scalar_lea.vmem %s5, 56
      %v2476 = vld [vmem:[%s2475] sm:$0xf]
      %v2477 = vld [vmem:[%s2475 + $0x4] sm:$0xf]
      %v2480 = vunpack.c.l.b16 %v2476
      %v2481 = vunpack.c.l.b16 %v2477
      %v2482 = vpack.c.b16 %v2481, %v2480
      %v2485 = vsel %vm1787, %v2474, 0
      %2487 = vmatprep.subr.bf16.mxu0 0
      %2488 = vmatpush1.bf16.msra.mxu0 0
      %2489 = vmatprep.subr.bf16.mxu0 0
      %2490 = vmatpush1.bf16.msra.mxu0 0
      %2491 = vmatprep.subr.bf16.mxu0 0
      %2492 = vmatpush1.bf16.msra.mxu0 0
      %2493 = vmatprep.subr.bf16.mxu0 0
      %2494 = vmatpush1.bf16.msra.mxu0 0
      %2495 = vmatprep.subr.bf16.mxu0 0
      %2496 = vmatpush1.bf16.msra.mxu0 0
      %2497 = vmatprep.subr.bf16.mxu0 0
      %2498 = vmatpush1.bf16.msra.mxu0 0
      %2499 = vmatprep.subr.bf16.mxu0 0
      %2500 = vmatpush1.bf16.msra.mxu0 0
      %2501 = vmatprep.subr.bf16.mxu0 0
      %2502 = vmatpush1.bf16.msra.mxu0 %v2482
      %2503 = vmatprep.subr.bf16.mxu0 0
      %2504 = vmatpush2.bf16.msra.mxu0 0
      %2505 = vmatprep.subr.bf16.mxu0 0
      %2506 = vmatpush2.bf16.msra.mxu0 0
      %2507 = vmatprep.subr.bf16.mxu0 0
      %2508 = vmatpush2.bf16.msra.mxu0 0
      %2509 = vmatprep.subr.bf16.mxu0 0
      %2510 = vmatpush2.bf16.msra.mxu0 0
      %2511 = vmatprep.subr.bf16.mxu0 0
      %2512 = vmatpush2.bf16.msra.mxu0 0
      %2513 = vmatprep.subr.bf16.mxu0 0
      %2514 = vmatpush2.bf16.msra.mxu0 0
      %2515 = vmatprep.subr.bf16.mxu0 0
      %2516 = vmatpush2.bf16.msra.mxu0 0
      %2517 = vmatprep.subr.bf16.mxu0 0
      %2518 = vmatpush2.bf16.msra.mxu0 0
      %2519 = vmatprep.mubr.bf16.mxu0 0
      %2520 = vmatmul.mubr.bf16.gmra.mxu0 %v2485
      %v2521 = vpop.f32.mrf.mxu0
      %v2522 = vadd.f32 0.0, %v2521
      %v2523 = vpop.f32.mrf.mxu0
      %v2524 = vpop.f32.mrf.mxu0
      %v2525 = vadd.f32 0.0, %v2524
      %v2526 = vpop.f32.mrf.mxu0
      %2527 = vdwg.mxu0
      %v2528 = vadd.f32 %v2420, %v2522
      %v2529 = vadd.f32 %v2421, %v2525
      %s2530 = scalar_lea.vmem %s4, 64
      %v2531 = vld [vmem:[%s2530] sm:$0xf]
      %v2532 = vld [vmem:[%s2530 + $0x4] sm:$0xf]
      %v2535 = vunpack.c.l.b16 %v2531
      %v2536 = vunpack.c.l.b16 %v2532
      %v2537 = vpack.c.b16 %v2536, %v2535
      %v2539 = vsel %vm1677, %v2537, 0
      %2541 = vmatprep.subr.bf16.mxu0 0
      %2542 = vmatpush1.bf16.msra.mxu0 0
      %2543 = vmatprep.subr.bf16.mxu0 0
      %2544 = vmatpush1.bf16.msra.mxu0 0
      %2545 = vmatprep.subr.bf16.mxu0 0
      %2546 = vmatpush1.bf16.msra.mxu0 0
      %2547 = vmatprep.subr.bf16.mxu0 0
      %2548 = vmatpush1.bf16.msra.mxu0 0
      %2549 = vmatprep.subr.bf16.mxu0 0
      %2550 = vmatpush1.bf16.msra.mxu0 %v1669
      %2551 = vmatprep.subr.bf16.mxu0 0
      %2552 = vmatpush1.bf16.msra.mxu0 %v1668
      %2553 = vmatprep.subr.bf16.mxu0 0
      %2554 = vmatpush1.bf16.msra.mxu0 %v1667
      %2555 = vmatprep.subr.bf16.mxu0 0
      %2556 = vmatpush1.bf16.msra.mxu0 %v1666
      %2557 = vmatprep.subr.bf16.mxu0 0
      %2558 = vmatpush2.bf16.msra.mxu0 0
      %2559 = vmatprep.subr.bf16.mxu0 0
      %2560 = vmatpush2.bf16.msra.mxu0 0
      %2561 = vmatprep.subr.bf16.mxu0 0
      %2562 = vmatpush2.bf16.msra.mxu0 0
      %2563 = vmatprep.subr.bf16.mxu0 0
      %2564 = vmatpush2.bf16.msra.mxu0 0
      %2565 = vmatprep.subr.bf16.mxu0 0
      %2566 = vmatpush2.bf16.msra.mxu0 0
      %2567 = vmatprep.subr.bf16.mxu0 0
      %2568 = vmatpush2.bf16.msra.mxu0 0
      %2569 = vmatprep.subr.bf16.mxu0 0
      %2570 = vmatpush2.bf16.msra.mxu0 0
      %2571 = vmatprep.subr.bf16.mxu0 0
      %2572 = vmatpush2.bf16.msra.mxu0 0
      %2573 = vmatprep.mubr.bf16.mxu0 0
      %2574 = vmatmul.mubr.bf16.gmra.mxu0 %v2539
      %v2575 = vpop.f32.mrf.mxu0
      %v2576 = vadd.f32 0.0, %v2575
      %v2577 = vpop.f32.mrf.mxu0
      %v2578 = vpop.f32.mrf.mxu0
      %v2579 = vadd.f32 0.0, %v2578
      %v2580 = vpop.f32.mrf.mxu0
      %2581 = vdwg.mxu0
      %v2582 = vpack.c.bf16 %v2579, %v2576
      %s2583 = scalar_lea.vmem %s5, 64
      %v2584 = vld [vmem:[%s2583] sm:$0xf]
      %v2585 = vld [vmem:[%s2583 + $0x4] sm:$0xf]
      %v2588 = vunpack.c.l.b16 %v2584
      %v2589 = vunpack.c.l.b16 %v2585
      %v2590 = vpack.c.b16 %v2589, %v2588
      %v2593 = vsel %vm1787, %v2582, 0
      %2595 = vmatprep.subr.bf16.mxu0 0
      %2596 = vmatpush1.bf16.msra.mxu0 0
      %2597 = vmatprep.subr.bf16.mxu0 0
      %2598 = vmatpush1.bf16.msra.mxu0 0
      %2599 = vmatprep.subr.bf16.mxu0 0
      %2600 = vmatpush1.bf16.msra.mxu0 0
      %2601 = vmatprep.subr.bf16.mxu0 0
      %2602 = vmatpush1.bf16.msra.mxu0 0
      %2603 = vmatprep.subr.bf16.mxu0 0
      %2604 = vmatpush1.bf16.msra.mxu0 0
      %2605 = vmatprep.subr.bf16.mxu0 0
      %2606 = vmatpush1.bf16.msra.mxu0 0
      %2607 = vmatprep.subr.bf16.mxu0 0
      %2608 = vmatpush1.bf16.msra.mxu0 0
      %2609 = vmatprep.subr.bf16.mxu0 0
      %2610 = vmatpush1.bf16.msra.mxu0 %v2590
      %2611 = vmatprep.subr.bf16.mxu0 0
      %2612 = vmatpush2.bf16.msra.mxu0 0
      %2613 = vmatprep.subr.bf16.mxu0 0
      %2614 = vmatpush2.bf16.msra.mxu0 0
      %2615 = vmatprep.subr.bf16.mxu0 0
      %2616 = vmatpush2.bf16.msra.mxu0 0
      %2617 = vmatprep.subr.bf16.mxu0 0
      %2618 = vmatpush2.bf16.msra.mxu0 0
      %2619 = vmatprep.subr.bf16.mxu0 0
      %2620 = vmatpush2.bf16.msra.mxu0 0
      %2621 = vmatprep.subr.bf16.mxu0 0
      %2622 = vmatpush2.bf16.msra.mxu0 0
      %2623 = vmatprep.subr.bf16.mxu0 0
      %2624 = vmatpush2.bf16.msra.mxu0 0
      %2625 = vmatprep.subr.bf16.mxu0 0
      %2626 = vmatpush2.bf16.msra.mxu0 0
      %2627 = vmatprep.mubr.bf16.mxu0 0
      %2628 = vmatmul.mubr.bf16.gmra.mxu0 %v2593
      %v2629 = vpop.f32.mrf.mxu0
      %v2630 = vadd.f32 0.0, %v2629
      %v2631 = vpop.f32.mrf.mxu0
      %v2632 = vpop.f32.mrf.mxu0
      %v2633 = vadd.f32 0.0, %v2632
      %v2634 = vpop.f32.mrf.mxu0
      %2635 = vdwg.mxu0
      %v2636 = vadd.f32 %v2528, %v2630
      %v2637 = vadd.f32 %v2529, %v2633
      %v2638 = vld [vmem:[#allocation2] sm:$0x1]
      %v2640 = vlaneseq
      %v2641 = vshrl.u32 %v2640, 7
      %v2642 = vsub.s32 0, %v2641
      %v2643 = vrot.slane %v2638, %v2642
      %v2645 = vadd.f32 %v2636, %v2643
      %v2646 = vadd.f32 %v2637, %v2643
      %v2647 = vmax.f32 %v2645, 0.0
      %v2648 = vmax.f32 %v2646, 0.0
      %vm2649 = vcmask 7168
      %2650 = vst.msk [vmem:[%s280] sm:$0xff] %vm2649, %v2647
      %2651 = vst.msk [vmem:[%s280 + $0x8] sm:$0xff] %vm2649, %v2648
      %p2652 = scmp.lt.s32.totalorder %s20, 1
      %s2653 = scalar_select %p2652, %s20, 1
      %s2654 = smul.addr %s2653, 2
      %s2655 = smul.addr %s2654, 8
      %s2656 = scalar_lea.vmem %s7, %s2655
      // Predicated region
      $region49: #{forward.1} parent=47 // pred_check
        %p2657 = pneg %p190
      $region50: #{forward.1} parent=47 // pred_check_branch
        %2659 = sbr.rel (%p2657) target = $region52
      $region51: #{forward.1} parent=47 // pred_region
        _
      $region52: #{forward.1} parent=47 // pred_fallthru
        _
    $region48: #{forward.1} parent=5 // pred_fallthru
      _
    %p2660 = scmp.le.s32.totalorder 2, %s15
    // Predicated region
    $region53: #{forward.1} parent=5 // pred_check
      %p2661 = pneg %p2660
    $region54: #{forward.1} parent=5 // pred_check_branch
      %2663 = sbr.rel (%p2661) target = $region56
    $region55: #{forward.1} parent=5 // pred_region
      %s2664 = ssub.s32 %s15, 2
      // Predicated region
      $region57: #{forward.1} parent=55 // pred_check
        %p2665 = pneg %p196
      $region58: #{forward.1} parent=55 // pred_check_branch
        %2667 = sbr.rel (%p2665) target = $region60
      $region59: #{forward.1} parent=55 // pred_region
        %p2668 = scmp.lt.s32.totalorder %s21, 1
        %s2669 = scalar_select %p2668, %s21, 1
        %s2670 = smul.addr %s2669, 2
        %s2671 = smul.addr %s2670, 8
        %s2672 = scalar_lea.vmem %s7, %s2671
      $region60: #{forward.1} parent=55 // pred_fallthru
        _
    $region56: #{forward.1} parent=5 // pred_fallthru
      _
  $region6: #{forward.1} parent=0 // loop_footer
    %s19 = sadd.s32 1, %s15
  $region7: #{forward.1} parent=0 // loop_footer_branch
    %14 = sbr.rel target = $region3
  $region8: #{forward.1} parent=0 // loop_exit
    _

</llo_original>
